<compile_context>
chip_gen: v7x
topology: tpu7x:2x2x1
jax: 0.10.0
libtpu: 0.0.40
codegen_flags: <defaults>
</compile_context>

<pallas_src>
import jax
import jax.numpy as jnp
from jax import lax
from jax.experimental import pallas as pl
from jax.experimental.pallas import tpu as pltpu
import numpy as np

# ----------------------------- model config ---------------------------------
VOCAB_SIZE = 32
VOCAB_EMBEDDING_SIZE = 16
LSTM_SIZE = 32
LSTM_LAYERS = 2          # kernel below is written for exactly 2 layers
ENCODING_SIZE = 16
BATCH = 2
SEQ_LEN = 8
BATCH_PAD = 8            # pad batch to a full 8-sublane vreg


# ------------------------------ Pallas kernel -------------------------------
def lstm_encoder_kernel(ids_ref,     # (S*Bp, 1) int32  VMEM, row = t*Bp + b
                        wstep_ref,   # (2H, 8H)  bf16   [[w_hh0, w_ih1],[0, w_hh1]]
                        wmisc_ref,   # (V+4H,4H) bf16   [emb @ w_ih0 ; w_out lane-padded]
                        fvec_ref,    # (8, 4H)   f32    [b0; b1; b_out_pad; init; 0...]
                        out_ref):    # (Bp, 4H)  f32    first ENC lanes valid
    B, S, H, V = BATCH_PAD, SEQ_LEN, LSTM_SIZE, VOCAB_SIZE

    # ---- f32 biases / initial state (single-row slices of the small slab) ----
    b0 = fvec_ref[0:1, :]                       # (1, 4H)
    b1 = fvec_ref[1:2, :]                       # (1, 4H)
    b_out = fvec_ref[2:3, :]                    # (1, 4H)  (first ENC lanes = bias)
    init = fvec_ref[3:4, :]                     # (1, 4H) = [h0_l0|c0_l0|h0_l1|c0_l1]
    h_l0 = jnp.broadcast_to(init[:, 0 * H:1 * H], (B, H))
    c_l0 = jnp.broadcast_to(init[:, 1 * H:2 * H], (B, H))
    h_l1 = jnp.broadcast_to(init[:, 2 * H:3 * H], (B, H))
    c_l1 = jnp.broadcast_to(init[:, 3 * H:4 * H], (B, H))

    # ---- bf16 weight slabs (static, tile-aligned slices) ----
    w_step = wstep_ref[...]                     # (2H, 8H)
    emb_proj = wmisc_ref[0:V, :]                # (V, 4H)   = emb @ w_ih0
    w_out = wmisc_ref[V:V + 4 * H, :]           # (4H, 4H)  lane-padded output weight

    # ---- one-hot embedding gather fused with the layer-0 input projection ----
    # z0_all[t*B + b] = emb[x[b, t]] @ w_ih0 + b0
    ids = ids_ref[...]                                          # (S*B, 1) int32
    iota = lax.broadcasted_iota(jnp.int32, (S * B, V), 1)
    one_hot = (iota == ids).astype(jnp.bfloat16)                # (S*B, V)
    z0_all = jnp.dot(one_hot, emb_proj,
                     preferred_element_type=jnp.float32) + b0   # (S*B, 4H) f32

    def gates(z, c):
        # 2 EUP pushes over the full 4H lanes; all gate math stays f32.
        s = jax.nn.sigmoid(z)
        th = jnp.tanh(z)
        i = s[:, 0 * H:1 * H]
        f = s[:, 1 * H:2 * H]
        g = th[:, 2 * H:3 * H]
        o = s[:, 3 * H:4 * H]
        c_new = f * c + i * g
        return o * jnp.tanh(c_new), c_new

    def step_matmul(h0v, h1v):
        # single fused MXU push per step:
        #   [h_l0 | h_l1] @ [[w_hh0, w_ih1],[0, w_hh1]] -> (B, 8H)
        hcat = jnp.concatenate([h0v, h1v], axis=1).astype(jnp.bfloat16)   # (B, 2H)
        return jnp.dot(hcat, w_step, preferred_element_type=jnp.float32)  # (B, 8H)

    # pre-loop push: left half = h_l0(init) @ w_hh0 (bottom-left block is zero)
    zz = step_matmul(h_l0, h_l1)

    # ---- fully-unrolled recurrence (S static): all slices sublane/lane aligned ----
    for t in range(S):
        z0 = z0_all[t * B:(t + 1) * B, :] + zz[:, 0:4 * H]
        h_l0, c_l0 = gates(z0, c_l0)
        zz = step_matmul(h_l0, h_l1)            # left half feeds step t+1's z0
        z1 = zz[:, 4 * H:8 * H] + b1            # b1 only on the layer-1 half
        h_l1, c_l1 = gates(z1, c_l1)

    # ---- final Linear: one (B,128)@(128,128) dot, lane-dense store ----
    state = jnp.concatenate([h_l0, c_l0, h_l1, c_l1], axis=1).astype(jnp.bfloat16)
    out_ref[...] = jnp.dot(state, w_out, preferred_element_type=jnp.float32) + b_out


# ------------------------- one-time parameter packing ------------------------
def pack_params(params):
    """Pack parameters into the 3 kernel operands. Done once at init, not per call."""
    H, V, ENC = LSTM_SIZE, VOCAB_SIZE, ENCODING_SIZE

    # fused per-step weight: [[w_hh0, w_ih1], [0, w_hh1]] -> (2H, 8H), bf16
    top = jnp.concatenate([params["w_hh0"], params["w_ih1"]], axis=1)
    bot = jnp.concatenate([jnp.zeros((H, 4 * H), jnp.float32), params["w_hh1"]], axis=1)
    wstep = jnp.concatenate([top, bot], axis=0).astype(jnp.bfloat16)

    # 128-lane bf16 slab: [emb @ w_ih0 ; w_out padded to 128 lanes]
    emb_proj = params["embedding"] @ params["w_ih0"]                       # (V, 4H)
    w_out_pad = jnp.zeros((4 * H, 4 * H), jnp.float32).at[:, :ENC].set(params["w_out"])
    wmisc = jnp.concatenate([emb_proj, w_out_pad], axis=0).astype(jnp.bfloat16)

    # small f32 slab: biases + initial state, one 128-lane row each
    init = jnp.concatenate([params["h0"][0, 0], params["c0"][0, 0],
                            params["h0"][1, 0], params["c0"][1, 0]], axis=0)
    fvec = jnp.zeros((8, 4 * H), jnp.float32)
    fvec = fvec.at[0, :].set(params["b0"][0])
    fvec = fvec.at[1, :].set(params["b1"][0])
    fvec = fvec.at[2, :ENC].set(params["b_out"][0])
    fvec = fvec.at[3, :].set(init)
    return {"wstep": wstep, "wmisc": wmisc, "fvec": fvec}


# ------------------------------ wrapper --------------------------------------
@jax.jit
def lstm_encoder_forward(x_ids, packed):
    """x_ids: (batch, seq) int32 token ids.  packed: output of pack_params()."""
    batch, seq = x_ids.shape
    Bp = BATCH_PAD

    # pad batch 2 -> 8 so every (B, .) intermediate fills a whole vreg sublane-wise
    x_pad = jnp.zeros((Bp, seq), jnp.int32).at[:batch, :].set(x_ids.astype(jnp.int32))
    ids_col = x_pad.T.reshape(seq * Bp, 1)          # row = t*Bp + b

    vmem = pl.BlockSpec(memory_space=pltpu.MemorySpace.VMEM)
    out = pl.pallas_call(
        lstm_encoder_kernel,
        out_shape=jax.ShapeDtypeStruct((Bp, 4 * LSTM_SIZE), jnp.float32),
        in_specs=[vmem, vmem, vmem, vmem],
        out_specs=vmem,
    )(ids_col, packed["wstep"], packed["wmisc"], packed["fvec"])
    return out[:batch, :ENCODING_SIZE]


# ------------------------- deterministic param init --------------------------
def init_params(key):
    H, E, L, V, ENC = LSTM_SIZE, VOCAB_EMBEDDING_SIZE, LSTM_LAYERS, VOCAB_SIZE, ENCODING_SIZE
    ks = jax.random.split(key, 12)
    k = 1.0 / np.sqrt(H)
    u = lambda kk, shape, bound: jax.random.uniform(
        kk, shape, jnp.float32, minval=-bound, maxval=bound)

    params = {
        # nn.Parameter(zeros) in __init__
        "h0": jnp.zeros((L, 1, H), jnp.float32),
        "c0": jnp.zeros((L, 1, H), jnp.float32),
        # nn.Embedding(V, E)
        "embedding": jax.random.normal(ks[0], (V, E), jnp.float32),
        # layer 0: weight_ih (4H, E), weight_hh (4H, H) stored transposed for x @ W
        "w_ih0": u(ks[1], (E, 4 * H), k),
        "w_hh0": u(ks[2], (H, 4 * H), k),
        "b0": u(ks[3], (1, 4 * H), k) + u(ks[4], (1, 4 * H), k),   # bias_ih + bias_hh
        # layer 1
        "w_ih1": u(ks[5], (H, 4 * H), k),
        "w_hh1": u(ks[6], (H, 4 * H), k),
        "b1": u(ks[7], (1, 4 * H), k) + u(ks[8], (1, 4 * H), k),
        # output Linear(2*H*L, ENC) stored transposed
        "w_out": u(ks[9], (2 * H * L, ENC), 1.0 / np.sqrt(2 * H * L)),
        "b_out": u(ks[10], (1, ENC), 1.0 / np.sqrt(2 * H * L)),
    }
    return params


# ------------------------------ pure-JAX reference ---------------------------
def reference_forward(x_ids, p):
    H = LSTM_SIZE
    x = p["embedding"][x_ids.T]                                   # (seq, B, E)
    B = x_ids.shape[0]

    def cell(x_t, h, c, w_ih, w_hh, b):
        z = x_t @ w_ih + h @ w_hh + b
        i = jax.nn.sigmoid(z[:, 0 * H:1 * H])
        f = jax.nn.sigmoid(z[:, 1 * H:2 * H])
        g = jnp.tanh(z[:, 2 * H:3 * H])
        o = jax.nn.sigmoid(z[:, 3 * H:4 * H])
        c_new = f * c + i * g
        return o * jnp.tanh(c_new), c_new

    h0 = jnp.broadcast_to(p["h0"][0], (B, H))
    c0 = jnp.broadcast_to(p["c0"][0], (B, H))
    h1 = jnp.broadcast_to(p["h0"][1], (B, H))
    c1 = jnp.broadcast_to(p["c0"][1], (B, H))
    for t in range(x.shape[0]):
        h0, c0 = cell(x[t], h0, c0, p["w_ih0"], p["w_hh0"], p["b0"])
        h1, c1 = cell(h0, h1, c1, p["w_ih1"], p["w_hh1"], p["b1"])
    state = jnp.concatenate([h0, c0, h1, c1], axis=1)
    return state @ p["w_out"] + p["b_out"]


# ---------------------------------- main --------------------------------------
if __name__ == "__main__":
    key = jax.random.PRNGKey(0)
    k_param, k_data = jax.random.split(key)
    params = init_params(k_param)
    packed = pack_params(params)

    x_ids = jax.random.randint(k_data, (BATCH, SEQ_LEN), 0, VOCAB_SIZE, dtype=jnp.int32)

    out = lstm_encoder_forward(x_ids, packed)
    out = jax.block_until_ready(out)

    ref = reference_forward(x_ids, params)
    # bf16 MXU inputs (f32 accumulation, f32 gate math) -> relaxed tolerance
    np.testing.assert_allclose(np.asarray(out), np.asarray(ref), atol=5e-2, rtol=5e-2)

    print("KERNEL_OK")
</pallas_src>

<mosaic_0001>
module attributes {stable_mosaic.version = 11 : i64} {
  func.func @lstm_encoder_kernel(%arg0: memref<64x1xi32, #tpu.memory_space<vmem>>, %arg1: memref<64x256xbf16, #tpu.memory_space<vmem>>, %arg2: memref<160x128xbf16, #tpu.memory_space<vmem>>, %arg3: memref<8x128xf32, #tpu.memory_space<vmem>>, %arg4: memref<8x128xf32, #tpu.memory_space<vmem>>) attributes {dimension_semantics = [], scalar_prefetch = 0 : i64, scratch_operands = 0 : i64, tpu.core_type = #tpu.core_type<tc>} {
    %c0 = arith.constant 0 : index
    %c0_0 = arith.constant 0 : index
    %0 = vector.load %arg3[%c0, %c0_0] : memref<8x128xf32, #tpu.memory_space<vmem>>, vector<1x128xf32>
    %c1 = arith.constant 1 : index
    %c0_1 = arith.constant 0 : index
    %1 = vector.load %arg3[%c1, %c0_1] : memref<8x128xf32, #tpu.memory_space<vmem>>, vector<1x128xf32>
    %c2 = arith.constant 2 : index
    %c0_2 = arith.constant 0 : index
    %2 = vector.load %arg3[%c2, %c0_2] : memref<8x128xf32, #tpu.memory_space<vmem>>, vector<1x128xf32>
    %c3 = arith.constant 3 : index
    %c0_3 = arith.constant 0 : index
    %3 = vector.load %arg3[%c3, %c0_3] : memref<8x128xf32, #tpu.memory_space<vmem>>, vector<1x128xf32>
    %4 = vector.extract_strided_slice %3 {offsets = [0, 0], sizes = [1, 32], strides = [1, 1]} : vector<1x128xf32> to vector<1x32xf32>
    %5 = vector.shape_cast %4 : vector<1x32xf32> to vector<1x32xf32>
    %6 = vector.broadcast %5 : vector<1x32xf32> to vector<8x32xf32>
    %7 = vector.extract_strided_slice %3 {offsets = [0, 32], sizes = [1, 32], strides = [1, 1]} : vector<1x128xf32> to vector<1x32xf32>
    %8 = vector.shape_cast %7 : vector<1x32xf32> to vector<1x32xf32>
    %9 = vector.broadcast %8 : vector<1x32xf32> to vector<8x32xf32>
    %10 = vector.extract_strided_slice %3 {offsets = [0, 64], sizes = [1, 32], strides = [1, 1]} : vector<1x128xf32> to vector<1x32xf32>
    %11 = vector.shape_cast %10 : vector<1x32xf32> to vector<1x32xf32>
    %12 = vector.broadcast %11 : vector<1x32xf32> to vector<8x32xf32>
    %13 = vector.extract_strided_slice %3 {offsets = [0, 96], sizes = [1, 32], strides = [1, 1]} : vector<1x128xf32> to vector<1x32xf32>
    %14 = vector.shape_cast %13 : vector<1x32xf32> to vector<1x32xf32>
    %15 = vector.broadcast %14 : vector<1x32xf32> to vector<8x32xf32>
    %c0_4 = arith.constant 0 : index
    %c0_5 = arith.constant 0 : index
    %16 = vector.load %arg1[%c0_4, %c0_5] : memref<64x256xbf16, #tpu.memory_space<vmem>>, vector<64x256xbf16>
    %c0_6 = arith.constant 0 : index
    %c0_7 = arith.constant 0 : index
    %17 = vector.load %arg2[%c0_6, %c0_7] : memref<160x128xbf16, #tpu.memory_space<vmem>>, vector<32x128xbf16>
    %c32 = arith.constant 32 : index
    %c0_8 = arith.constant 0 : index
    %18 = vector.load %arg2[%c32, %c0_8] : memref<160x128xbf16, #tpu.memory_space<vmem>>, vector<128x128xbf16>
    %c0_9 = arith.constant 0 : index
    %c0_10 = arith.constant 0 : index
    %19 = vector.load %arg0[%c0_9, %c0_10] : memref<64x1xi32, #tpu.memory_space<vmem>>, vector<64x1xi32>
    %20 = tpu.iota {dimensions = array<i32: 1>} : vector<64x32xi32>
    %21 = vector.broadcast %19 : vector<64x1xi32> to vector<64x32xi32>
    %22 = arith.cmpi eq, %20, %21 : vector<64x32xi32>
    %23 = arith.extui %22 : vector<64x32xi1> to vector<64x32xi32>
    %24 = arith.sitofp %23 : vector<64x32xi32> to vector<64x32xf32>
    %25 = arith.truncf %24 : vector<64x32xf32> to vector<64x32xbf16>
    %cst = arith.constant dense<0.000000e+00> : vector<64x128xf32>
    %26 = tpu.matmul %25, %17, %cst {dimension_numbers = #tpu.dot_dimension_numbers<[1], [0], [0], [1], [0, 0, 1, 1], [], []>} : vector<64x32xbf16>, vector<32x128xbf16>, vector<64x128xf32> -> vector<64x128xf32>
    %27 = vector.broadcast %0 : vector<1x128xf32> to vector<64x128xf32>
    %28 = arith.addf %26, %27 : vector<64x128xf32>
    %29 = tpu.concatenate %6, %12 in 1 : vector<8x32xf32>, vector<8x32xf32> -> vector<8x64xf32>
    %30 = arith.truncf %29 : vector<8x64xf32> to vector<8x64xbf16>
    %cst_11 = arith.constant dense<0.000000e+00> : vector<8x256xf32>
    %31 = tpu.matmul %30, %16, %cst_11 {dimension_numbers = #tpu.dot_dimension_numbers<[1], [0], [0], [1], [0, 0, 1, 1], [], []>} : vector<8x64xbf16>, vector<64x256xbf16>, vector<8x256xf32> -> vector<8x256xf32>
    %32 = vector.extract_strided_slice %28 {offsets = [0, 0], sizes = [8, 128], strides = [1, 1]} : vector<64x128xf32> to vector<8x128xf32>
    %33 = vector.extract_strided_slice %31 {offsets = [0, 0], sizes = [8, 128], strides = [1, 1]} : vector<8x256xf32> to vector<8x128xf32>
    %34 = arith.addf %32, %33 : vector<8x128xf32>
    %35 = arith.negf %34 : vector<8x128xf32>
    %36 = math.exp %35 : vector<8x128xf32>
    %cst_12 = arith.constant 1.000000e+00 : f32
    %37 = vector.broadcast %cst_12 : f32 to vector<8x128xf32>
    %38 = arith.addf %37, %36 : vector<8x128xf32>
    %39 = arith.divf %37, %38 : vector<8x128xf32>
    %40 = math.tanh %34 : vector<8x128xf32>
    %41 = vector.extract_strided_slice %39 {offsets = [0, 0], sizes = [8, 32], strides = [1, 1]} : vector<8x128xf32> to vector<8x32xf32>
    %42 = vector.extract_strided_slice %39 {offsets = [0, 32], sizes = [8, 32], strides = [1, 1]} : vector<8x128xf32> to vector<8x32xf32>
    %43 = vector.extract_strided_slice %40 {offsets = [0, 64], sizes = [8, 32], strides = [1, 1]} : vector<8x128xf32> to vector<8x32xf32>
    %44 = vector.extract_strided_slice %39 {offsets = [0, 96], sizes = [8, 32], strides = [1, 1]} : vector<8x128xf32> to vector<8x32xf32>
    %45 = arith.mulf %42, %9 : vector<8x32xf32>
    %46 = arith.mulf %41, %43 : vector<8x32xf32>
    %47 = arith.addf %45, %46 : vector<8x32xf32>
    %48 = math.tanh %47 : vector<8x32xf32>
    %49 = arith.mulf %44, %48 : vector<8x32xf32>
    %50 = tpu.concatenate %49, %12 in 1 : vector<8x32xf32>, vector<8x32xf32> -> vector<8x64xf32>
    %51 = arith.truncf %50 : vector<8x64xf32> to vector<8x64xbf16>
    %cst_13 = arith.constant dense<0.000000e+00> : vector<8x256xf32>
    %52 = tpu.matmul %51, %16, %cst_13 {dimension_numbers = #tpu.dot_dimension_numbers<[1], [0], [0], [1], [0, 0, 1, 1], [], []>} : vector<8x64xbf16>, vector<64x256xbf16>, vector<8x256xf32> -> vector<8x256xf32>
    %53 = vector.extract_strided_slice %52 {offsets = [0, 128], sizes = [8, 128], strides = [1, 1]} : vector<8x256xf32> to vector<8x128xf32>
    %54 = vector.broadcast %1 : vector<1x128xf32> to vector<8x128xf32>
    %55 = arith.addf %53, %54 : vector<8x128xf32>
    %56 = arith.negf %55 : vector<8x128xf32>
    %57 = math.exp %56 : vector<8x128xf32>
    %cst_14 = arith.constant 1.000000e+00 : f32
    %58 = vector.broadcast %cst_14 : f32 to vector<8x128xf32>
    %59 = arith.addf %58, %57 : vector<8x128xf32>
    %60 = arith.divf %58, %59 : vector<8x128xf32>
    %61 = math.tanh %55 : vector<8x128xf32>
    %62 = vector.extract_strided_slice %60 {offsets = [0, 0], sizes = [8, 32], strides = [1, 1]} : vector<8x128xf32> to vector<8x32xf32>
    %63 = vector.extract_strided_slice %60 {offsets = [0, 32], sizes = [8, 32], strides = [1, 1]} : vector<8x128xf32> to vector<8x32xf32>
    %64 = vector.extract_strided_slice %61 {offsets = [0, 64], sizes = [8, 32], strides = [1, 1]} : vector<8x128xf32> to vector<8x32xf32>
    %65 = vector.extract_strided_slice %60 {offsets = [0, 96], sizes = [8, 32], strides = [1, 1]} : vector<8x128xf32> to vector<8x32xf32>
    %66 = arith.mulf %63, %15 : vector<8x32xf32>
    %67 = arith.mulf %62, %64 : vector<8x32xf32>
    %68 = arith.addf %66, %67 : vector<8x32xf32>
    %69 = math.tanh %68 : vector<8x32xf32>
    %70 = arith.mulf %65, %69 : vector<8x32xf32>
    %71 = vector.extract_strided_slice %28 {offsets = [8, 0], sizes = [8, 128], strides = [1, 1]} : vector<64x128xf32> to vector<8x128xf32>
    %72 = vector.extract_strided_slice %52 {offsets = [0, 0], sizes = [8, 128], strides = [1, 1]} : vector<8x256xf32> to vector<8x128xf32>
    %73 = arith.addf %71, %72 : vector<8x128xf32>
    %74 = arith.negf %73 : vector<8x128xf32>
    %75 = math.exp %74 : vector<8x128xf32>
    %cst_15 = arith.constant 1.000000e+00 : f32
    %76 = vector.broadcast %cst_15 : f32 to vector<8x128xf32>
    %77 = arith.addf %76, %75 : vector<8x128xf32>
    %78 = arith.divf %76, %77 : vector<8x128xf32>
    %79 = math.tanh %73 : vector<8x128xf32>
    %80 = vector.extract_strided_slice %78 {offsets = [0, 0], sizes = [8, 32], strides = [1, 1]} : vector<8x128xf32> to vector<8x32xf32>
    %81 = vector.extract_strided_slice %78 {offsets = [0, 32], sizes = [8, 32], strides = [1, 1]} : vector<8x128xf32> to vector<8x32xf32>
    %82 = vector.extract_strided_slice %79 {offsets = [0, 64], sizes = [8, 32], strides = [1, 1]} : vector<8x128xf32> to vector<8x32xf32>
    %83 = vector.extract_strided_slice %78 {offsets = [0, 96], sizes = [8, 32], strides = [1, 1]} : vector<8x128xf32> to vector<8x32xf32>
    %84 = arith.mulf %81, %47 : vector<8x32xf32>
    %85 = arith.mulf %80, %82 : vector<8x32xf32>
    %86 = arith.addf %84, %85 : vector<8x32xf32>
    %87 = math.tanh %86 : vector<8x32xf32>
    %88 = arith.mulf %83, %87 : vector<8x32xf32>
    %89 = tpu.concatenate %88, %70 in 1 : vector<8x32xf32>, vector<8x32xf32> -> vector<8x64xf32>
    %90 = arith.truncf %89 : vector<8x64xf32> to vector<8x64xbf16>
    %cst_16 = arith.constant dense<0.000000e+00> : vector<8x256xf32>
    %91 = tpu.matmul %90, %16, %cst_16 {dimension_numbers = #tpu.dot_dimension_numbers<[1], [0], [0], [1], [0, 0, 1, 1], [], []>} : vector<8x64xbf16>, vector<64x256xbf16>, vector<8x256xf32> -> vector<8x256xf32>
    %92 = vector.extract_strided_slice %91 {offsets = [0, 128], sizes = [8, 128], strides = [1, 1]} : vector<8x256xf32> to vector<8x128xf32>
    %93 = vector.broadcast %1 : vector<1x128xf32> to vector<8x128xf32>
    %94 = arith.addf %92, %93 : vector<8x128xf32>
    %95 = arith.negf %94 : vector<8x128xf32>
    %96 = math.exp %95 : vector<8x128xf32>
    %cst_17 = arith.constant 1.000000e+00 : f32
    %97 = vector.broadcast %cst_17 : f32 to vector<8x128xf32>
    %98 = arith.addf %97, %96 : vector<8x128xf32>
    %99 = arith.divf %97, %98 : vector<8x128xf32>
    %100 = math.tanh %94 : vector<8x128xf32>
    %101 = vector.extract_strided_slice %99 {offsets = [0, 0], sizes = [8, 32], strides = [1, 1]} : vector<8x128xf32> to vector<8x32xf32>
    %102 = vector.extract_strided_slice %99 {offsets = [0, 32], sizes = [8, 32], strides = [1, 1]} : vector<8x128xf32> to vector<8x32xf32>
    %103 = vector.extract_strided_slice %100 {offsets = [0, 64], sizes = [8, 32], strides = [1, 1]} : vector<8x128xf32> to vector<8x32xf32>
    %104 = vector.extract_strided_slice %99 {offsets = [0, 96], sizes = [8, 32], strides = [1, 1]} : vector<8x128xf32> to vector<8x32xf32>
    %105 = arith.mulf %102, %68 : vector<8x32xf32>
    %106 = arith.mulf %101, %103 : vector<8x32xf32>
    %107 = arith.addf %105, %106 : vector<8x32xf32>
    %108 = math.tanh %107 : vector<8x32xf32>
    %109 = arith.mulf %104, %108 : vector<8x32xf32>
    %110 = vector.extract_strided_slice %28 {offsets = [16, 0], sizes = [8, 128], strides = [1, 1]} : vector<64x128xf32> to vector<8x128xf32>
    %111 = vector.extract_strided_slice %91 {offsets = [0, 0], sizes = [8, 128], strides = [1, 1]} : vector<8x256xf32> to vector<8x128xf32>
    %112 = arith.addf %110, %111 : vector<8x128xf32>
    %113 = arith.negf %112 : vector<8x128xf32>
    %114 = math.exp %113 : vector<8x128xf32>
    %cst_18 = arith.constant 1.000000e+00 : f32
    %115 = vector.broadcast %cst_18 : f32 to vector<8x128xf32>
    %116 = arith.addf %115, %114 : vector<8x128xf32>
    %117 = arith.divf %115, %116 : vector<8x128xf32>
    %118 = math.tanh %112 : vector<8x128xf32>
    %119 = vector.extract_strided_slice %117 {offsets = [0, 0], sizes = [8, 32], strides = [1, 1]} : vector<8x128xf32> to vector<8x32xf32>
    %120 = vector.extract_strided_slice %117 {offsets = [0, 32], sizes = [8, 32], strides = [1, 1]} : vector<8x128xf32> to vector<8x32xf32>
    %121 = vector.extract_strided_slice %118 {offsets = [0, 64], sizes = [8, 32], strides = [1, 1]} : vector<8x128xf32> to vector<8x32xf32>
    %122 = vector.extract_strided_slice %117 {offsets = [0, 96], sizes = [8, 32], strides = [1, 1]} : vector<8x128xf32> to vector<8x32xf32>
    %123 = arith.mulf %120, %86 : vector<8x32xf32>
    %124 = arith.mulf %119, %121 : vector<8x32xf32>
    %125 = arith.addf %123, %124 : vector<8x32xf32>
    %126 = math.tanh %125 : vector<8x32xf32>
    %127 = arith.mulf %122, %126 : vector<8x32xf32>
    %128 = tpu.concatenate %127, %109 in 1 : vector<8x32xf32>, vector<8x32xf32> -> vector<8x64xf32>
    %129 = arith.truncf %128 : vector<8x64xf32> to vector<8x64xbf16>
    %cst_19 = arith.constant dense<0.000000e+00> : vector<8x256xf32>
    %130 = tpu.matmul %129, %16, %cst_19 {dimension_numbers = #tpu.dot_dimension_numbers<[1], [0], [0], [1], [0, 0, 1, 1], [], []>} : vector<8x64xbf16>, vector<64x256xbf16>, vector<8x256xf32> -> vector<8x256xf32>
    %131 = vector.extract_strided_slice %130 {offsets = [0, 128], sizes = [8, 128], strides = [1, 1]} : vector<8x256xf32> to vector<8x128xf32>
    %132 = vector.broadcast %1 : vector<1x128xf32> to vector<8x128xf32>
    %133 = arith.addf %131, %132 : vector<8x128xf32>
    %134 = arith.negf %133 : vector<8x128xf32>
    %135 = math.exp %134 : vector<8x128xf32>
    %cst_20 = arith.constant 1.000000e+00 : f32
    %136 = vector.broadcast %cst_20 : f32 to vector<8x128xf32>
    %137 = arith.addf %136, %135 : vector<8x128xf32>
    %138 = arith.divf %136, %137 : vector<8x128xf32>
    %139 = math.tanh %133 : vector<8x128xf32>
    %140 = vector.extract_strided_slice %138 {offsets = [0, 0], sizes = [8, 32], strides = [1, 1]} : vector<8x128xf32> to vector<8x32xf32>
    %141 = vector.extract_strided_slice %138 {offsets = [0, 32], sizes = [8, 32], strides = [1, 1]} : vector<8x128xf32> to vector<8x32xf32>
    %142 = vector.extract_strided_slice %139 {offsets = [0, 64], sizes = [8, 32], strides = [1, 1]} : vector<8x128xf32> to vector<8x32xf32>
    %143 = vector.extract_strided_slice %138 {offsets = [0, 96], sizes = [8, 32], strides = [1, 1]} : vector<8x128xf32> to vector<8x32xf32>
    %144 = arith.mulf %141, %107 : vector<8x32xf32>
    %145 = arith.mulf %140, %142 : vector<8x32xf32>
    %146 = arith.addf %144, %145 : vector<8x32xf32>
    %147 = math.tanh %146 : vector<8x32xf32>
    %148 = arith.mulf %143, %147 : vector<8x32xf32>
    %149 = vector.extract_strided_slice %28 {offsets = [24, 0], sizes = [8, 128], strides = [1, 1]} : vector<64x128xf32> to vector<8x128xf32>
    %150 = vector.extract_strided_slice %130 {offsets = [0, 0], sizes = [8, 128], strides = [1, 1]} : vector<8x256xf32> to vector<8x128xf32>
    %151 = arith.addf %149, %150 : vector<8x128xf32>
    %152 = arith.negf %151 : vector<8x128xf32>
    %153 = math.exp %152 : vector<8x128xf32>
    %cst_21 = arith.constant 1.000000e+00 : f32
    %154 = vector.broadcast %cst_21 : f32 to vector<8x128xf32>
    %155 = arith.addf %154, %153 : vector<8x128xf32>
    %156 = arith.divf %154, %155 : vector<8x128xf32>
    %157 = math.tanh %151 : vector<8x128xf32>
    %158 = vector.extract_strided_slice %156 {offsets = [0, 0], sizes = [8, 32], strides = [1, 1]} : vector<8x128xf32> to vector<8x32xf32>
    %159 = vector.extract_strided_slice %156 {offsets = [0, 32], sizes = [8, 32], strides = [1, 1]} : vector<8x128xf32> to vector<8x32xf32>
    %160 = vector.extract_strided_slice %157 {offsets = [0, 64], sizes = [8, 32], strides = [1, 1]} : vector<8x128xf32> to vector<8x32xf32>
    %161 = vector.extract_strided_slice %156 {offsets = [0, 96], sizes = [8, 32], strides = [1, 1]} : vector<8x128xf32> to vector<8x32xf32>
    %162 = arith.mulf %159, %125 : vector<8x32xf32>
    %163 = arith.mulf %158, %160 : vector<8x32xf32>
    %164 = arith.addf %162, %163 : vector<8x32xf32>
    %165 = math.tanh %164 : vector<8x32xf32>
    %166 = arith.mulf %161, %165 : vector<8x32xf32>
    %167 = tpu.concatenate %166, %148 in 1 : vector<8x32xf32>, vector<8x32xf32> -> vector<8x64xf32>
    %168 = arith.truncf %167 : vector<8x64xf32> to vector<8x64xbf16>
    %cst_22 = arith.constant dense<0.000000e+00> : vector<8x256xf32>
    %169 = tpu.matmul %168, %16, %cst_22 {dimension_numbers = #tpu.dot_dimension_numbers<[1], [0], [0], [1], [0, 0, 1, 1], [], []>} : vector<8x64xbf16>, vector<64x256xbf16>, vector<8x256xf32> -> vector<8x256xf32>
    %170 = vector.extract_strided_slice %169 {offsets = [0, 128], sizes = [8, 128], strides = [1, 1]} : vector<8x256xf32> to vector<8x128xf32>
    %171 = vector.broadcast %1 : vector<1x128xf32> to vector<8x128xf32>
    %172 = arith.addf %170, %171 : vector<8x128xf32>
    %173 = arith.negf %172 : vector<8x128xf32>
    %174 = math.exp %173 : vector<8x128xf32>
    %cst_23 = arith.constant 1.000000e+00 : f32
    %175 = vector.broadcast %cst_23 : f32 to vector<8x128xf32>
    %176 = arith.addf %175, %174 : vector<8x128xf32>
    %177 = arith.divf %175, %176 : vector<8x128xf32>
    %178 = math.tanh %172 : vector<8x128xf32>
    %179 = vector.extract_strided_slice %177 {offsets = [0, 0], sizes = [8, 32], strides = [1, 1]} : vector<8x128xf32> to vector<8x32xf32>
    %180 = vector.extract_strided_slice %177 {offsets = [0, 32], sizes = [8, 32], strides = [1, 1]} : vector<8x128xf32> to vector<8x32xf32>
    %181 = vector.extract_strided_slice %178 {offsets = [0, 64], sizes = [8, 32], strides = [1, 1]} : vector<8x128xf32> to vector<8x32xf32>
    %182 = vector.extract_strided_slice %177 {offsets = [0, 96], sizes = [8, 32], strides = [1, 1]} : vector<8x128xf32> to vector<8x32xf32>
    %183 = arith.mulf %180, %146 : vector<8x32xf32>
    %184 = arith.mulf %179, %181 : vector<8x32xf32>
    %185 = arith.addf %183, %184 : vector<8x32xf32>
    %186 = math.tanh %185 : vector<8x32xf32>
    %187 = arith.mulf %182, %186 : vector<8x32xf32>
    %188 = vector.extract_strided_slice %28 {offsets = [32, 0], sizes = [8, 128], strides = [1, 1]} : vector<64x128xf32> to vector<8x128xf32>
    %189 = vector.extract_strided_slice %169 {offsets = [0, 0], sizes = [8, 128], strides = [1, 1]} : vector<8x256xf32> to vector<8x128xf32>
    %190 = arith.addf %188, %189 : vector<8x128xf32>
    %191 = arith.negf %190 : vector<8x128xf32>
    %192 = math.exp %191 : vector<8x128xf32>
    %cst_24 = arith.constant 1.000000e+00 : f32
    %193 = vector.broadcast %cst_24 : f32 to vector<8x128xf32>
    %194 = arith.addf %193, %192 : vector<8x128xf32>
    %195 = arith.divf %193, %194 : vector<8x128xf32>
    %196 = math.tanh %190 : vector<8x128xf32>
    %197 = vector.extract_strided_slice %195 {offsets = [0, 0], sizes = [8, 32], strides = [1, 1]} : vector<8x128xf32> to vector<8x32xf32>
    %198 = vector.extract_strided_slice %195 {offsets = [0, 32], sizes = [8, 32], strides = [1, 1]} : vector<8x128xf32> to vector<8x32xf32>
    %199 = vector.extract_strided_slice %196 {offsets = [0, 64], sizes = [8, 32], strides = [1, 1]} : vector<8x128xf32> to vector<8x32xf32>
    %200 = vector.extract_strided_slice %195 {offsets = [0, 96], sizes = [8, 32], strides = [1, 1]} : vector<8x128xf32> to vector<8x32xf32>
    %201 = arith.mulf %198, %164 : vector<8x32xf32>
    %202 = arith.mulf %197, %199 : vector<8x32xf32>
    %203 = arith.addf %201, %202 : vector<8x32xf32>
    %204 = math.tanh %203 : vector<8x32xf32>
    %205 = arith.mulf %200, %204 : vector<8x32xf32>
    %206 = tpu.concatenate %205, %187 in 1 : vector<8x32xf32>, vector<8x32xf32> -> vector<8x64xf32>
    %207 = arith.truncf %206 : vector<8x64xf32> to vector<8x64xbf16>
    %cst_25 = arith.constant dense<0.000000e+00> : vector<8x256xf32>
    %208 = tpu.matmul %207, %16, %cst_25 {dimension_numbers = #tpu.dot_dimension_numbers<[1], [0], [0], [1], [0, 0, 1, 1], [], []>} : vector<8x64xbf16>, vector<64x256xbf16>, vector<8x256xf32> -> vector<8x256xf32>
    %209 = vector.extract_strided_slice %208 {offsets = [0, 128], sizes = [8, 128], strides = [1, 1]} : vector<8x256xf32> to vector<8x128xf32>
    %210 = vector.broadcast %1 : vector<1x128xf32> to vector<8x128xf32>
    %211 = arith.addf %209, %210 : vector<8x128xf32>
    %212 = arith.negf %211 : vector<8x128xf32>
    %213 = math.exp %212 : vector<8x128xf32>
    %cst_26 = arith.constant 1.000000e+00 : f32
    %214 = vector.broadcast %cst_26 : f32 to vector<8x128xf32>
    %215 = arith.addf %214, %213 : vector<8x128xf32>
    %216 = arith.divf %214, %215 : vector<8x128xf32>
    %217 = math.tanh %211 : vector<8x128xf32>
    %218 = vector.extract_strided_slice %216 {offsets = [0, 0], sizes = [8, 32], strides = [1, 1]} : vector<8x128xf32> to vector<8x32xf32>
    %219 = vector.extract_strided_slice %216 {offsets = [0, 32], sizes = [8, 32], strides = [1, 1]} : vector<8x128xf32> to vector<8x32xf32>
    %220 = vector.extract_strided_slice %217 {offsets = [0, 64], sizes = [8, 32], strides = [1, 1]} : vector<8x128xf32> to vector<8x32xf32>
    %221 = vector.extract_strided_slice %216 {offsets = [0, 96], sizes = [8, 32], strides = [1, 1]} : vector<8x128xf32> to vector<8x32xf32>
    %222 = arith.mulf %219, %185 : vector<8x32xf32>
    %223 = arith.mulf %218, %220 : vector<8x32xf32>
    %224 = arith.addf %222, %223 : vector<8x32xf32>
    %225 = math.tanh %224 : vector<8x32xf32>
    %226 = arith.mulf %221, %225 : vector<8x32xf32>
    %227 = vector.extract_strided_slice %28 {offsets = [40, 0], sizes = [8, 128], strides = [1, 1]} : vector<64x128xf32> to vector<8x128xf32>
    %228 = vector.extract_strided_slice %208 {offsets = [0, 0], sizes = [8, 128], strides = [1, 1]} : vector<8x256xf32> to vector<8x128xf32>
    %229 = arith.addf %227, %228 : vector<8x128xf32>
    %230 = arith.negf %229 : vector<8x128xf32>
    %231 = math.exp %230 : vector<8x128xf32>
    %cst_27 = arith.constant 1.000000e+00 : f32
    %232 = vector.broadcast %cst_27 : f32 to vector<8x128xf32>
    %233 = arith.addf %232, %231 : vector<8x128xf32>
    %234 = arith.divf %232, %233 : vector<8x128xf32>
    %235 = math.tanh %229 : vector<8x128xf32>
    %236 = vector.extract_strided_slice %234 {offsets = [0, 0], sizes = [8, 32], strides = [1, 1]} : vector<8x128xf32> to vector<8x32xf32>
    %237 = vector.extract_strided_slice %234 {offsets = [0, 32], sizes = [8, 32], strides = [1, 1]} : vector<8x128xf32> to vector<8x32xf32>
    %238 = vector.extract_strided_slice %235 {offsets = [0, 64], sizes = [8, 32], strides = [1, 1]} : vector<8x128xf32> to vector<8x32xf32>
    %239 = vector.extract_strided_slice %234 {offsets = [0, 96], sizes = [8, 32], strides = [1, 1]} : vector<8x128xf32> to vector<8x32xf32>
    %240 = arith.mulf %237, %203 : vector<8x32xf32>
    %241 = arith.mulf %236, %238 : vector<8x32xf32>
    %242 = arith.addf %240, %241 : vector<8x32xf32>
    %243 = math.tanh %242 : vector<8x32xf32>
    %244 = arith.mulf %239, %243 : vector<8x32xf32>
    %245 = tpu.concatenate %244, %226 in 1 : vector<8x32xf32>, vector<8x32xf32> -> vector<8x64xf32>
    %246 = arith.truncf %245 : vector<8x64xf32> to vector<8x64xbf16>
    %cst_28 = arith.constant dense<0.000000e+00> : vector<8x256xf32>
    %247 = tpu.matmul %246, %16, %cst_28 {dimension_numbers = #tpu.dot_dimension_numbers<[1], [0], [0], [1], [0, 0, 1, 1], [], []>} : vector<8x64xbf16>, vector<64x256xbf16>, vector<8x256xf32> -> vector<8x256xf32>
    %248 = vector.extract_strided_slice %247 {offsets = [0, 128], sizes = [8, 128], strides = [1, 1]} : vector<8x256xf32> to vector<8x128xf32>
    %249 = vector.broadcast %1 : vector<1x128xf32> to vector<8x128xf32>
    %250 = arith.addf %248, %249 : vector<8x128xf32>
    %251 = arith.negf %250 : vector<8x128xf32>
    %252 = math.exp %251 : vector<8x128xf32>
    %cst_29 = arith.constant 1.000000e+00 : f32
    %253 = vector.broadcast %cst_29 : f32 to vector<8x128xf32>
    %254 = arith.addf %253, %252 : vector<8x128xf32>
    %255 = arith.divf %253, %254 : vector<8x128xf32>
    %256 = math.tanh %250 : vector<8x128xf32>
    %257 = vector.extract_strided_slice %255 {offsets = [0, 0], sizes = [8, 32], strides = [1, 1]} : vector<8x128xf32> to vector<8x32xf32>
    %258 = vector.extract_strided_slice %255 {offsets = [0, 32], sizes = [8, 32], strides = [1, 1]} : vector<8x128xf32> to vector<8x32xf32>
    %259 = vector.extract_strided_slice %256 {offsets = [0, 64], sizes = [8, 32], strides = [1, 1]} : vector<8x128xf32> to vector<8x32xf32>
    %260 = vector.extract_strided_slice %255 {offsets = [0, 96], sizes = [8, 32], strides = [1, 1]} : vector<8x128xf32> to vector<8x32xf32>
    %261 = arith.mulf %258, %224 : vector<8x32xf32>
    %262 = arith.mulf %257, %259 : vector<8x32xf32>
    %263 = arith.addf %261, %262 : vector<8x32xf32>
    %264 = math.tanh %263 : vector<8x32xf32>
    %265 = arith.mulf %260, %264 : vector<8x32xf32>
    %266 = vector.extract_strided_slice %28 {offsets = [48, 0], sizes = [8, 128], strides = [1, 1]} : vector<64x128xf32> to vector<8x128xf32>
    %267 = vector.extract_strided_slice %247 {offsets = [0, 0], sizes = [8, 128], strides = [1, 1]} : vector<8x256xf32> to vector<8x128xf32>
    %268 = arith.addf %266, %267 : vector<8x128xf32>
    %269 = arith.negf %268 : vector<8x128xf32>
    %270 = math.exp %269 : vector<8x128xf32>
    %cst_30 = arith.constant 1.000000e+00 : f32
    %271 = vector.broadcast %cst_30 : f32 to vector<8x128xf32>
    %272 = arith.addf %271, %270 : vector<8x128xf32>
    %273 = arith.divf %271, %272 : vector<8x128xf32>
    %274 = math.tanh %268 : vector<8x128xf32>
    %275 = vector.extract_strided_slice %273 {offsets = [0, 0], sizes = [8, 32], strides = [1, 1]} : vector<8x128xf32> to vector<8x32xf32>
    %276 = vector.extract_strided_slice %273 {offsets = [0, 32], sizes = [8, 32], strides = [1, 1]} : vector<8x128xf32> to vector<8x32xf32>
    %277 = vector.extract_strided_slice %274 {offsets = [0, 64], sizes = [8, 32], strides = [1, 1]} : vector<8x128xf32> to vector<8x32xf32>
    %278 = vector.extract_strided_slice %273 {offsets = [0, 96], sizes = [8, 32], strides = [1, 1]} : vector<8x128xf32> to vector<8x32xf32>
    %279 = arith.mulf %276, %242 : vector<8x32xf32>
    %280 = arith.mulf %275, %277 : vector<8x32xf32>
    %281 = arith.addf %279, %280 : vector<8x32xf32>
    %282 = math.tanh %281 : vector<8x32xf32>
    %283 = arith.mulf %278, %282 : vector<8x32xf32>
    %284 = tpu.concatenate %283, %265 in 1 : vector<8x32xf32>, vector<8x32xf32> -> vector<8x64xf32>
    %285 = arith.truncf %284 : vector<8x64xf32> to vector<8x64xbf16>
    %cst_31 = arith.constant dense<0.000000e+00> : vector<8x256xf32>
    %286 = tpu.matmul %285, %16, %cst_31 {dimension_numbers = #tpu.dot_dimension_numbers<[1], [0], [0], [1], [0, 0, 1, 1], [], []>} : vector<8x64xbf16>, vector<64x256xbf16>, vector<8x256xf32> -> vector<8x256xf32>
    %287 = vector.extract_strided_slice %286 {offsets = [0, 128], sizes = [8, 128], strides = [1, 1]} : vector<8x256xf32> to vector<8x128xf32>
    %288 = vector.broadcast %1 : vector<1x128xf32> to vector<8x128xf32>
    %289 = arith.addf %287, %288 : vector<8x128xf32>
    %290 = arith.negf %289 : vector<8x128xf32>
    %291 = math.exp %290 : vector<8x128xf32>
    %cst_32 = arith.constant 1.000000e+00 : f32
    %292 = vector.broadcast %cst_32 : f32 to vector<8x128xf32>
    %293 = arith.addf %292, %291 : vector<8x128xf32>
    %294 = arith.divf %292, %293 : vector<8x128xf32>
    %295 = math.tanh %289 : vector<8x128xf32>
    %296 = vector.extract_strided_slice %294 {offsets = [0, 0], sizes = [8, 32], strides = [1, 1]} : vector<8x128xf32> to vector<8x32xf32>
    %297 = vector.extract_strided_slice %294 {offsets = [0, 32], sizes = [8, 32], strides = [1, 1]} : vector<8x128xf32> to vector<8x32xf32>
    %298 = vector.extract_strided_slice %295 {offsets = [0, 64], sizes = [8, 32], strides = [1, 1]} : vector<8x128xf32> to vector<8x32xf32>
    %299 = vector.extract_strided_slice %294 {offsets = [0, 96], sizes = [8, 32], strides = [1, 1]} : vector<8x128xf32> to vector<8x32xf32>
    %300 = arith.mulf %297, %263 : vector<8x32xf32>
    %301 = arith.mulf %296, %298 : vector<8x32xf32>
    %302 = arith.addf %300, %301 : vector<8x32xf32>
    %303 = math.tanh %302 : vector<8x32xf32>
    %304 = arith.mulf %299, %303 : vector<8x32xf32>
    %305 = vector.extract_strided_slice %28 {offsets = [56, 0], sizes = [8, 128], strides = [1, 1]} : vector<64x128xf32> to vector<8x128xf32>
    %306 = vector.extract_strided_slice %286 {offsets = [0, 0], sizes = [8, 128], strides = [1, 1]} : vector<8x256xf32> to vector<8x128xf32>
    %307 = arith.addf %305, %306 : vector<8x128xf32>
    %308 = arith.negf %307 : vector<8x128xf32>
    %309 = math.exp %308 : vector<8x128xf32>
    %cst_33 = arith.constant 1.000000e+00 : f32
    %310 = vector.broadcast %cst_33 : f32 to vector<8x128xf32>
    %311 = arith.addf %310, %309 : vector<8x128xf32>
    %312 = arith.divf %310, %311 : vector<8x128xf32>
    %313 = math.tanh %307 : vector<8x128xf32>
    %314 = vector.extract_strided_slice %312 {offsets = [0, 0], sizes = [8, 32], strides = [1, 1]} : vector<8x128xf32> to vector<8x32xf32>
    %315 = vector.extract_strided_slice %312 {offsets = [0, 32], sizes = [8, 32], strides = [1, 1]} : vector<8x128xf32> to vector<8x32xf32>
    %316 = vector.extract_strided_slice %313 {offsets = [0, 64], sizes = [8, 32], strides = [1, 1]} : vector<8x128xf32> to vector<8x32xf32>
    %317 = vector.extract_strided_slice %312 {offsets = [0, 96], sizes = [8, 32], strides = [1, 1]} : vector<8x128xf32> to vector<8x32xf32>
    %318 = arith.mulf %315, %281 : vector<8x32xf32>
    %319 = arith.mulf %314, %316 : vector<8x32xf32>
    %320 = arith.addf %318, %319 : vector<8x32xf32>
    %321 = math.tanh %320 : vector<8x32xf32>
    %322 = arith.mulf %317, %321 : vector<8x32xf32>
    %323 = tpu.concatenate %322, %304 in 1 : vector<8x32xf32>, vector<8x32xf32> -> vector<8x64xf32>
    %324 = arith.truncf %323 : vector<8x64xf32> to vector<8x64xbf16>
    %cst_34 = arith.constant dense<0.000000e+00> : vector<8x256xf32>
    %325 = tpu.matmul %324, %16, %cst_34 {dimension_numbers = #tpu.dot_dimension_numbers<[1], [0], [0], [1], [0, 0, 1, 1], [], []>} : vector<8x64xbf16>, vector<64x256xbf16>, vector<8x256xf32> -> vector<8x256xf32>
    %326 = vector.extract_strided_slice %325 {offsets = [0, 128], sizes = [8, 128], strides = [1, 1]} : vector<8x256xf32> to vector<8x128xf32>
    %327 = vector.broadcast %1 : vector<1x128xf32> to vector<8x128xf32>
    %328 = arith.addf %326, %327 : vector<8x128xf32>
    %329 = arith.negf %328 : vector<8x128xf32>
    %330 = math.exp %329 : vector<8x128xf32>
    %cst_35 = arith.constant 1.000000e+00 : f32
    %331 = vector.broadcast %cst_35 : f32 to vector<8x128xf32>
    %332 = arith.addf %331, %330 : vector<8x128xf32>
    %333 = arith.divf %331, %332 : vector<8x128xf32>
    %334 = math.tanh %328 : vector<8x128xf32>
    %335 = vector.extract_strided_slice %333 {offsets = [0, 0], sizes = [8, 32], strides = [1, 1]} : vector<8x128xf32> to vector<8x32xf32>
    %336 = vector.extract_strided_slice %333 {offsets = [0, 32], sizes = [8, 32], strides = [1, 1]} : vector<8x128xf32> to vector<8x32xf32>
    %337 = vector.extract_strided_slice %334 {offsets = [0, 64], sizes = [8, 32], strides = [1, 1]} : vector<8x128xf32> to vector<8x32xf32>
    %338 = vector.extract_strided_slice %333 {offsets = [0, 96], sizes = [8, 32], strides = [1, 1]} : vector<8x128xf32> to vector<8x32xf32>
    %339 = arith.mulf %336, %302 : vector<8x32xf32>
    %340 = arith.mulf %335, %337 : vector<8x32xf32>
    %341 = arith.addf %339, %340 : vector<8x32xf32>
    %342 = math.tanh %341 : vector<8x32xf32>
    %343 = arith.mulf %338, %342 : vector<8x32xf32>
    %344 = tpu.concatenate %322, %320, %343, %341 in 1 : vector<8x32xf32>, vector<8x32xf32>, vector<8x32xf32>, vector<8x32xf32> -> vector<8x128xf32>
    %345 = arith.truncf %344 : vector<8x128xf32> to vector<8x128xbf16>
    %cst_36 = arith.constant dense<0.000000e+00> : vector<8x128xf32>
    %346 = tpu.matmul %345, %18, %cst_36 {dimension_numbers = #tpu.dot_dimension_numbers<[1], [0], [0], [1], [0, 0, 1, 1], [], []>} : vector<8x128xbf16>, vector<128x128xbf16>, vector<8x128xf32> -> vector<8x128xf32>
    %347 = vector.broadcast %2 : vector<1x128xf32> to vector<8x128xf32>
    %348 = arith.addf %346, %347 : vector<8x128xf32>
    %c0_37 = arith.constant 0 : index
    %c0_38 = arith.constant 0 : index
    %349 = vector.load %arg4[%c0_37, %c0_38] : memref<8x128xf32, #tpu.memory_space<vmem>>, vector<8x128xf32>
    tpu.vector_store %arg4[%c0_37, %c0_38], %348 {strides = array<i32>} : memref<8x128xf32, #tpu.memory_space<vmem>>, vector<8x128xf32>,
    return
  }
}

</mosaic_0001>

<llo_original>
// kernel: lstm_encoder_forward.1
$region0: #{lstm_encoder_forward.1}
  #allocation0 [shape = 'u32[]', space=smem, size = 0x4, offset = 0x4, fixed_abs, tag = 'smem constant byte address 0x4 - core index']
  #allocation1 [shape = 'u32[144,128]{1,0:T(1,128)}', space=vmem, size = 0x12000, scoped, tag = 'internal scratch']
  %s0 = inlined_call_operand.vmem [shape: s32[64,1], index: 0, kind: input, shape index: {}]
  %s1 = inlined_call_operand.hbm [shape: bf16[64,256], index: 1, kind: input, shape index: {}]
  %s2 = inlined_call_operand.vmem [shape: bf16[160,128], index: 2, kind: input, shape index: {}]
  %s3 = inlined_call_operand.vmem [shape: f32[8,128], index: 3, kind: input, shape index: {}]
  %s4 = inlined_call_operand.vmem [shape: f32[8,128], index: 4, kind: output, shape index: {}]
  %s5 = sld [smem:[#allocation0]]
  $region30: #{lstm_encoder_forward.1} parent=0
    _
  %s7 = ssub.s32 1, %s5
  %s8 = scalar_select 0, %s7, %s5
  $region1: #{lstm_encoder_forward.1} parent=0
    #allocation2 [shape = 'u8[32768]{0}', space=vmem, size = 0x8000, scoped, tag = 'input window, operand 1, single buffered']
    #allocation3 [shape = 's32[1]{0}', space=sflag, size = 0x4, scoped, tag = 'scoped memory for lstm_encoder_forward.1']
    %9 = vsyncpa [#allocation3], 0
    // Predicated region
    $region2: #{lstm_encoder_forward.1} parent=1 // pred_check
      _
    $region3: #{lstm_encoder_forward.1} parent=1 // pred_check_branch
      %11 = sbr.rel (0) target = $region5
    $region4: #{lstm_encoder_forward.1} parent=1 // pred_region
      _
    $region5: #{lstm_encoder_forward.1} parent=1 // pred_fallthru
      _
    // Predicated region
    $region6: #{lstm_encoder_forward.1} parent=1 // pred_check
      _
    $region7: #{lstm_encoder_forward.1} parent=1 // pred_check_branch
      %13 = sbr.rel (0) target = $region9
    $region8: #{lstm_encoder_forward.1} parent=1 // pred_region
      %s15 = ssub.s32 1024, 1024
      %16 = vsyncadd [#allocation3], %s15
      %s17 = sshll.u32 [#allocation2], 4
      %s18 = int_to_ptr.vmem [resolvable:$true] %s17
      %23 = dma.hbm_to_vmem [thread:$0]  %s1, 1024, %s18, [#allocation3], 128, 128, 8
    $region9: #{lstm_encoder_forward.1} parent=1 // pred_fallthru
      _
    // Predicated region
    $region10: #{lstm_encoder_forward.1} parent=1 // pred_check
      _
    $region11: #{lstm_encoder_forward.1} parent=1 // pred_check_branch
      %25 = sbr.rel (0) target = $region13
    $region12: #{lstm_encoder_forward.1} parent=1 // pred_region
      _
    $region13: #{lstm_encoder_forward.1} parent=1 // pred_fallthru
      _
    // Predicated region
    $region14: #{lstm_encoder_forward.1} parent=1 // pred_check
      _
    $region15: #{lstm_encoder_forward.1} parent=1 // pred_check_branch
      %27 = sbr.rel (0) target = $region17
    $region16: #{lstm_encoder_forward.1} parent=1 // pred_region
      _
    $region17: #{lstm_encoder_forward.1} parent=1 // pred_fallthru
      _
    // Predicated region
    $region18: #{lstm_encoder_forward.1} parent=1 // pred_check
      _
    $region19: #{lstm_encoder_forward.1} parent=1 // pred_check_branch
      %29 = sbr.rel (0) target = $region21
    $region20: #{lstm_encoder_forward.1} parent=1 // pred_region
      %30 = dma.done [#allocation3], 1024
    $region21: #{lstm_encoder_forward.1} parent=1 // pred_fallthru
      _
    %v32 = vld [vmem:[%s3] sm:$0x1]
    %v33 = vld [vmem:[%s3 + $0x1] sm:$0x1]
    %v34 = vld [vmem:[%s3 + $0x2] sm:$0x1]
    %v35 = vld [vmem:[%s3 + $0x3] sm:$0x1]
    %v36 = vlaneseq
    %v37 = vshrl.u32 %v36, 7
    %v38 = vsub.s32 0, %v37
    %v39 = vrot.slane %v35, %v38
    %v40 = vld [vmem:[#allocation2] sm:$0xff]
    %v41 = vld [vmem:[#allocation2 + $0x8] sm:$0xff]
    %v42 = vld [vmem:[#allocation2 + $0x10] sm:$0xff]
    %v43 = vld [vmem:[#allocation2 + $0x18] sm:$0xff]
    %v44 = vld [vmem:[#allocation2 + $0x20] sm:$0xff]
    %v45 = vld [vmem:[#allocation2 + $0x28] sm:$0xff]
    %v46 = vld [vmem:[#allocation2 + $0x30] sm:$0xff]
    %v47 = vld [vmem:[#allocation2 + $0x38] sm:$0xff]
    %v48 = vld [vmem:[%s2] sm:$0xf]
    %v49 = vld [vmem:[%s2 + $0x4] sm:$0xf]
    %v50 = vld [vmem:[%s2 + $0x8] sm:$0xf]
    %v51 = vld [vmem:[%s2 + $0xc] sm:$0xf]
    %v52 = vld [vmem:[%s2 + $0x10] sm:$0xf]
    %v53 = vld [vmem:[%s2 + $0x14] sm:$0xf]
    %v54 = vld [vmem:[%s2 + $0x18] sm:$0xf]
    %v55 = vld [vmem:[%s2 + $0x1c] sm:$0xf]
    %v56 = vld [vmem:[%s2 + $0x20] sm:$0xf]
    %v57 = vld [vmem:[%s2 + $0x24] sm:$0xf]
    %v58 = vld [vmem:[%s2 + $0x28] sm:$0xf]
    %v59 = vld [vmem:[%s2 + $0x2c] sm:$0xf]
    %v60 = vld [vmem:[%s2 + $0x30] sm:$0xf]
    %v61 = vld [vmem:[%s2 + $0x34] sm:$0xf]
    %v62 = vld [vmem:[%s2 + $0x38] sm:$0xf]
    %v63 = vld [vmem:[%s2 + $0x3c] sm:$0xf]
    %v64 = vld [vmem:[%s2 + $0x40] sm:$0xf]
    %v65 = vld [vmem:[%s2 + $0x44] sm:$0xf]
    %v66 = vld [vmem:[%s2 + $0x48] sm:$0xf]
    %v67 = vld [vmem:[%s2 + $0x4c] sm:$0xf]
    %v68 = vld [vmem:[%s0] sm:$0xff]
    %v69 = vld [vmem:[%s0 + $0x8] sm:$0xff]
    %v70 = vld [vmem:[%s0 + $0x10] sm:$0xff]
    %v71 = vld [vmem:[%s0 + $0x18] sm:$0xff]
    %v72 = vld [vmem:[%s0 + $0x20] sm:$0xff]
    %v73 = vld [vmem:[%s0 + $0x28] sm:$0xff]
    %v74 = vld [vmem:[%s0 + $0x30] sm:$0xff]
    %v75 = vld [vmem:[%s0 + $0x38] sm:$0xff]
    %v76 = vlaneseq
    %v77 = vand.u32 %v76, 127
    %78 = vset.pattern.permute.xlu0 0
    %79 = vperm.xlu0 %78, %v68
    %v80 = vpop.permute.xlu0 %79
    %81 = vset.pattern.permute.xlu0 0
    %82 = vperm.xlu0 %81, %v69
    %v83 = vpop.permute.xlu0 %82
    %84 = vset.pattern.permute.xlu0 0
    %85 = vperm.xlu0 %84, %v70
    %v86 = vpop.permute.xlu0 %85
    %87 = vset.pattern.permute.xlu0 0
    %88 = vperm.xlu0 %87, %v71
    %v89 = vpop.permute.xlu0 %88
    %90 = vset.pattern.permute.xlu0 0
    %91 = vperm.xlu0 %90, %v72
    %v92 = vpop.permute.xlu0 %91
    %93 = vset.pattern.permute.xlu0 0
    %94 = vperm.xlu0 %93, %v73
    %v95 = vpop.permute.xlu0 %94
    %96 = vset.pattern.permute.xlu0 0
    %97 = vperm.xlu0 %96, %v74
    %v98 = vpop.permute.xlu0 %97
    %99 = vset.pattern.permute.xlu0 0
    %100 = vperm.xlu0 %99, %v75
    %v101 = vpop.permute.xlu0 %100
    %vm102 = vcmp.eq.s32.totalorder %v77, %v80
    %vm103 = vcmp.eq.s32.totalorder %v77, %v83
    %vm104 = vcmp.eq.s32.totalorder %v77, %v86
    %vm105 = vcmp.eq.s32.totalorder %v77, %v89
    %vm106 = vcmp.eq.s32.totalorder %v77, %v92
    %vm107 = vcmp.eq.s32.totalorder %v77, %v95
    %vm108 = vcmp.eq.s32.totalorder %v77, %v98
    %vm109 = vcmp.eq.s32.totalorder %v77, %v101
    %v110 = vsel %vm102, 1, 0
    %v111 = vsel %vm103, 1, 0
    %v112 = vsel %vm104, 1, 0
    %v113 = vsel %vm105, 1, 0
    %v114 = vsel %vm106, 1, 0
    %v115 = vsel %vm107, 1, 0
    %v116 = vsel %vm108, 1, 0
    %v117 = vsel %vm109, 1, 0
    %v118 = vcvt.s32.f32 %v110
    %v119 = vcvt.s32.f32 %v111
    %v120 = vcvt.s32.f32 %v112
    %v121 = vcvt.s32.f32 %v113
    %v122 = vcvt.s32.f32 %v114
    %v123 = vcvt.s32.f32 %v115
    %v124 = vcvt.s32.f32 %v116
    %v125 = vcvt.s32.f32 %v117
    %v126 = vpack.c.bf16 %v119, %v118
    %v127 = vpack.c.bf16 %v121, %v120
    %v128 = vpack.c.bf16 %v123, %v122
    %v129 = vpack.c.bf16 %v125, %v124
    %v130 = vlaneseq
    %v131 = vshrl.u32 %v130, 7
    %v132 = vsub.s32 0, %v131
    %v133 = vrot.slane %v32, %v132
    %v138 = vunpack.c.l.b16 %v48
    %v139 = vunpack.c.l.b16 %v49
    %v140 = vunpack.c.l.b16 %v50
    %v141 = vunpack.c.l.b16 %v51
    %v142 = vpack.c.b16 %v139, %v138
    %v143 = vpack.c.b16 %v141, %v140
    %vm146 = vcmask 261120
    %v148 = vsel %vm146, %v126, 0
    %v151 = vsel %vm146, %v127, 0
    %v154 = vsel %vm146, %v128, 0
    %v157 = vsel %vm146, %v129, 0
    %159 = vmatprep.subr.bf16.mxu0 0
    %160 = vmatpush1.bf16.msra.mxu0 %v142
    %161 = vmatprep.subr.bf16.mxu0 0
    %162 = vmatpush1.bf16.msra.mxu0 %v143
    %163 = vmatprep.subr.bf16.mxu0 0
    %164 = vmatpush1.bf16.msra.mxu0 0
    %165 = vmatprep.subr.bf16.mxu0 0
    %166 = vmatpush1.bf16.msra.mxu0 0
    %167 = vmatprep.subr.bf16.mxu0 0
    %168 = vmatpush1.bf16.msra.mxu0 0
    %169 = vmatprep.subr.bf16.mxu0 0
    %170 = vmatpush1.bf16.msra.mxu0 0
    %171 = vmatprep.subr.bf16.mxu0 0
    %172 = vmatpush1.bf16.msra.mxu0 0
    %173 = vmatprep.subr.bf16.mxu0 0
    %174 = vmatpush1.bf16.msra.mxu0 0
    %175 = vmatprep.subr.bf16.mxu0 0
    %176 = vmatpush1.bf16.msra.mxu0 0
    %177 = vmatprep.subr.bf16.mxu0 0
    %178 = vmatpush1.bf16.msra.mxu0 0
    %179 = vmatprep.subr.bf16.mxu0 0
    %180 = vmatpush1.bf16.msra.mxu0 0
    %181 = vmatprep.subr.bf16.mxu0 0
    %182 = vmatpush1.bf16.msra.mxu0 0
    %183 = vmatprep.subr.bf16.mxu0 0
    %184 = vmatpush1.bf16.msra.mxu0 0
    %185 = vmatprep.subr.bf16.mxu0 0
    %186 = vmatpush1.bf16.msra.mxu0 0
    %187 = vmatprep.subr.bf16.mxu0 0
    %188 = vmatpush1.bf16.msra.mxu0 0
    %189 = vmatprep.subr.bf16.mxu0 0
    %190 = vmatpush1.bf16.msra.mxu0 0
    %191 = vmatprep.mubr.bf16.mxu0 0
    %192 = vmatmul.mubr.bf16.gmra.mrb[0].mxu0 %v148
    %v193 = vpop.f32.mrb[0].mxu0
    %v194 = vadd.f32 %v133, %v193
    %v195 = vpop.f32.mrb[0].mxu0
    %v196 = vpop.f32.mrb[0].mxu0
    %v197 = vadd.f32 %v133, %v196
    %v198 = vpop.f32.mrb[0].mxu0
    %199 = vmatprep.mubr.bf16.mxu0 0
    %200 = vmatmul.mubr.bf16.gmra.mrb[0].mxu0 %v151
    %v201 = vpop.f32.mrb[0].mxu0
    %v202 = vadd.f32 %v133, %v201
    %v203 = vpop.f32.mrb[0].mxu0
    %v204 = vpop.f32.mrb[0].mxu0
    %v205 = vadd.f32 %v133, %v204
    %v206 = vpop.f32.mrb[0].mxu0
    %207 = vmatprep.mubr.bf16.mxu0 0
    %208 = vmatmul.mubr.bf16.gmra.mrb[0].mxu0 %v154
    %v209 = vpop.f32.mrb[0].mxu0
    %v210 = vadd.f32 %v133, %v209
    %v211 = vpop.f32.mrb[0].mxu0
    %v212 = vpop.f32.mrb[0].mxu0
    %v213 = vadd.f32 %v133, %v212
    %v214 = vpop.f32.mrb[0].mxu0
    %215 = vmatprep.mubr.bf16.mxu0 0
    %216 = vmatmul.mubr.bf16.gmra.mrb[0].mxu0 %v157
    %v217 = vpop.f32.mrb[0].mxu0
    %v218 = vadd.f32 %v133, %v217
    %v219 = vpop.f32.mrb[0].mxu0
    %v220 = vpop.f32.mrb[0].mxu0
    %v221 = vadd.f32 %v133, %v220
    %v222 = vpop.f32.mrb[0].mxu0
    %223 = vdwg.mxu0
    %225 = vrot.lane.b32.xlu0 %v39, 96
    %v226 = vpop.permute.xlu0 %225
    %v228 = vsel %vm146, %v39, %v226
    %v229 = vpack.c.bf16 %v228, %v228
    %v238 = vunpack.c.l.b16 %v40
    %v239 = vunpack.c.h.b16 %v40
    %v240 = vunpack.c.l.b16 %v41
    %v241 = vunpack.c.h.b16 %v41
    %v242 = vunpack.c.l.b16 %v42
    %v243 = vunpack.c.h.b16 %v42
    %v244 = vunpack.c.l.b16 %v43
    %v245 = vunpack.c.h.b16 %v43
    %v246 = vunpack.c.l.b16 %v44
    %v247 = vunpack.c.h.b16 %v44
    %v248 = vunpack.c.l.b16 %v45
    %v249 = vunpack.c.h.b16 %v45
    %v250 = vunpack.c.l.b16 %v46
    %v251 = vunpack.c.h.b16 %v46
    %v252 = vunpack.c.l.b16 %v47
    %v253 = vunpack.c.h.b16 %v47
    %v254 = vpack.c.b16 %v240, %v238
    %v255 = vpack.c.b16 %v241, %v239
    %v256 = vpack.c.b16 %v244, %v242
    %v257 = vpack.c.b16 %v245, %v243
    %v258 = vpack.c.b16 %v248, %v246
    %v259 = vpack.c.b16 %v249, %v247
    %v260 = vpack.c.b16 %v252, %v250
    %v261 = vpack.c.b16 %v253, %v251
    %vm270 = vcmask 523264
    %v272 = vsel %vm270, %v229, 0
    %274 = vmatprep.subr.bf16.mxu0 %v255
    %275 = vmatpush1.bf16.msra.mxu0 %v254
    %276 = vmatprep.subr.bf16.mxu0 %v257
    %277 = vmatpush1.bf16.msra.mxu0 %v256
    %278 = vmatprep.subr.bf16.mxu0 %v259
    %279 = vmatpush1.bf16.msra.mxu0 %v258
    %280 = vmatprep.subr.bf16.mxu0 %v261
    %281 = vmatpush1.bf16.msra.mxu0 %v260
    %282 = vmatprep.subr.bf16.mxu0 0
    %283 = vmatpush1.bf16.msra.mxu0 0
    %284 = vmatprep.subr.bf16.mxu0 0
    %285 = vmatpush1.bf16.msra.mxu0 0
    %286 = vmatprep.subr.bf16.mxu0 0
    %287 = vmatpush1.bf16.msra.mxu0 0
    %288 = vmatprep.subr.bf16.mxu0 0
    %289 = vmatpush1.bf16.msra.mxu0 0
    %290 = vmatprep.subr.bf16.mxu0 0
    %291 = vmatpush1.bf16.msra.mxu0 0
    %292 = vmatprep.subr.bf16.mxu0 0
    %293 = vmatpush1.bf16.msra.mxu0 0
    %294 = vmatprep.subr.bf16.mxu0 0
    %295 = vmatpush1.bf16.msra.mxu0 0
    %296 = vmatprep.subr.bf16.mxu0 0
    %297 = vmatpush1.bf16.msra.mxu0 0
    %298 = vmatprep.subr.bf16.mxu0 0
    %299 = vmatpush1.bf16.msra.mxu0 0
    %300 = vmatprep.subr.bf16.mxu0 0
    %301 = vmatpush1.bf16.msra.mxu0 0
    %302 = vmatprep.subr.bf16.mxu0 0
    %303 = vmatpush1.bf16.msra.mxu0 0
    %304 = vmatprep.subr.bf16.mxu0 0
    %305 = vmatpush1.bf16.msra.mxu0 0
    %306 = vmatprep.mubr.bf16.mxu0 0
    %307 = vmatmul.mubr.bf16.gmra.mrb[0].mxu0 %v272
    %v308 = vpop.f32.mrb[0].mxu0
    %v309 = vadd.f32 0.0, %v308
    %v310 = vpop.f32.mrb[0].mxu0
    %v311 = vpop.f32.mrb[0].mxu0
    %v312 = vpop.f32.mrb[0].mxu0
    %313 = vdwg.mxu0
    %v314 = vadd.f32 %v194, %v309
    %v315 = vxor.u32 %v314, 2147483648
    %v316 = vmul.f32 %v315, 1.442695
    %v317 = vpow.pop %v316
    %v318 = vadd.f32 %v317, 1.0
    %v319 = vrcp.pop %v318
    %v320 = vmul.f32 1.0, %v319
    %v321 = vtanh.pop %v314
    %v322 = vmul.f32 %v320, %v39
    %324 = vrot.lane.b32.xlu0 %v321, 64
    %v325 = vpop.permute.xlu0 %324
    %v327 = vmul.f32 %v320, %v325
    %329 = vrot.lane.b32.xlu0 %v327, 32
    %v330 = vpop.permute.xlu0 %329
    %v332 = vadd.f32 %v322, %v330
    %v333 = vtanh.pop %v332
    %335 = vrot.lane.b32.xlu0 %v333, 64
    %v336 = vpop.permute.xlu0 %335
    %v338 = vmul.f32 %v320, %v336
    %340 = vrot.lane.b32.xlu0 %v338, 32
    %v341 = vpop.permute.xlu0 %340
    %v343 = vsel %vm146, %v341, %v226
    %v344 = vpack.c.bf16 %v343, %v343
    %v346 = vsel %vm270, %v344, 0
    %348 = vmatprep.subr.bf16.mxu0 %v255
    %349 = vmatpush1.bf16.msra.mxu0 %v254
    %350 = vmatprep.subr.bf16.mxu0 %v257
    %351 = vmatpush1.bf16.msra.mxu0 %v256
    %352 = vmatprep.subr.bf16.mxu0 %v259
    %353 = vmatpush1.bf16.msra.mxu0 %v258
    %354 = vmatprep.subr.bf16.mxu0 %v261
    %355 = vmatpush1.bf16.msra.mxu0 %v260
    %356 = vmatprep.subr.bf16.mxu0 0
    %357 = vmatpush1.bf16.msra.mxu0 0
    %358 = vmatprep.subr.bf16.mxu0 0
    %359 = vmatpush1.bf16.msra.mxu0 0
    %360 = vmatprep.subr.bf16.mxu0 0
    %361 = vmatpush1.bf16.msra.mxu0 0
    %362 = vmatprep.subr.bf16.mxu0 0
    %363 = vmatpush1.bf16.msra.mxu0 0
    %364 = vmatprep.subr.bf16.mxu0 0
    %365 = vmatpush1.bf16.msra.mxu0 0
    %366 = vmatprep.subr.bf16.mxu0 0
    %367 = vmatpush1.bf16.msra.mxu0 0
    %368 = vmatprep.subr.bf16.mxu0 0
    %369 = vmatpush1.bf16.msra.mxu0 0
    %370 = vmatprep.subr.bf16.mxu0 0
    %371 = vmatpush1.bf16.msra.mxu0 0
    %372 = vmatprep.subr.bf16.mxu0 0
    %373 = vmatpush1.bf16.msra.mxu0 0
    %374 = vmatprep.subr.bf16.mxu0 0
    %375 = vmatpush1.bf16.msra.mxu0 0
    %376 = vmatprep.subr.bf16.mxu0 0
    %377 = vmatpush1.bf16.msra.mxu0 0
    %378 = vmatprep.subr.bf16.mxu0 0
    %379 = vmatpush1.bf16.msra.mxu0 0
    %380 = vmatprep.mubr.bf16.mxu0 0
    %381 = vmatmul.mubr.bf16.gmra.mrb[0].mxu0 %v346
    %v382 = vpop.f32.mrb[0].mxu0
    %v383 = vadd.f32 0.0, %v382
    %v384 = vpop.f32.mrb[0].mxu0
    %v385 = vadd.f32 0.0, %v384
    %v386 = vpop.f32.mrb[0].mxu0
    %v387 = vpop.f32.mrb[0].mxu0
    %388 = vdwg.mxu0
    %v389 = vlaneseq
    %v390 = vshrl.u32 %v389, 7
    %v391 = vsub.s32 0, %v390
    %v392 = vrot.slane %v33, %v391
    %v393 = vadd.f32 %v385, %v392
    %v394 = vxor.u32 %v393, 2147483648
    %v395 = vmul.f32 %v394, 1.442695
    %v396 = vpow.pop %v395
    %v397 = vadd.f32 %v396, 1.0
    %v398 = vrcp.pop %v397
    %v399 = vmul.f32 1.0, %v398
    %v400 = vtanh.pop %v393
    %401 = vrot.lane.b32.xlu0 %v39, 64
    %v402 = vpop.permute.xlu0 %401
    %v404 = vmul.f32 %v399, %v402
    %406 = vrot.lane.b32.xlu0 %v400, 64
    %v407 = vpop.permute.xlu0 %406
    %v409 = vmul.f32 %v399, %v407
    %411 = vrot.lane.b32.xlu0 %v409, 32
    %v412 = vpop.permute.xlu0 %411
    %v414 = vadd.f32 %v404, %v412
    %v415 = vtanh.pop %v414
    %417 = vrot.lane.b32.xlu0 %v415, 64
    %v418 = vpop.permute.xlu0 %417
    %v420 = vmul.f32 %v399, %v418
    %v421 = vadd.f32 %v197, %v383
    %v422 = vxor.u32 %v421, 2147483648
    %v423 = vmul.f32 %v422, 1.442695
    %v424 = vpow.pop %v423
    %v425 = vadd.f32 %v424, 1.0
    %v426 = vrcp.pop %v425
    %v427 = vmul.f32 1.0, %v426
    %v428 = vtanh.pop %v421
    %v429 = vmul.f32 %v427, %v332
    %431 = vrot.lane.b32.xlu0 %v428, 64
    %v432 = vpop.permute.xlu0 %431
    %v434 = vmul.f32 %v427, %v432
    %436 = vrot.lane.b32.xlu0 %v434, 32
    %v437 = vpop.permute.xlu0 %436
    %v439 = vadd.f32 %v429, %v437
    %v440 = vtanh.pop %v439
    %442 = vrot.lane.b32.xlu0 %v440, 64
    %v443 = vpop.permute.xlu0 %442
    %v445 = vmul.f32 %v427, %v443
    %447 = vrot.lane.b32.xlu0 %v445, 32
    %v448 = vpop.permute.xlu0 %447
    %451 = vrot.lane.b32.xlu0 %v420, 64
    %v452 = vpop.permute.xlu0 %451
    %v454 = vsel %vm146, %v448, %v452
    %v455 = vpack.c.bf16 %v454, %v454
    %v457 = vsel %vm270, %v455, 0
    %459 = vmatprep.subr.bf16.mxu0 %v255
    %460 = vmatpush1.bf16.msra.mxu0 %v254
    %461 = vmatprep.subr.bf16.mxu0 %v257
    %462 = vmatpush1.bf16.msra.mxu0 %v256
    %463 = vmatprep.subr.bf16.mxu0 %v259
    %464 = vmatpush1.bf16.msra.mxu0 %v258
    %465 = vmatprep.subr.bf16.mxu0 %v261
    %466 = vmatpush1.bf16.msra.mxu0 %v260
    %467 = vmatprep.subr.bf16.mxu0 0
    %468 = vmatpush1.bf16.msra.mxu0 0
    %469 = vmatprep.subr.bf16.mxu0 0
    %470 = vmatpush1.bf16.msra.mxu0 0
    %471 = vmatprep.subr.bf16.mxu0 0
    %472 = vmatpush1.bf16.msra.mxu0 0
    %473 = vmatprep.subr.bf16.mxu0 0
    %474 = vmatpush1.bf16.msra.mxu0 0
    %475 = vmatprep.subr.bf16.mxu0 0
    %476 = vmatpush1.bf16.msra.mxu0 0
    %477 = vmatprep.subr.bf16.mxu0 0
    %478 = vmatpush1.bf16.msra.mxu0 0
    %479 = vmatprep.subr.bf16.mxu0 0
    %480 = vmatpush1.bf16.msra.mxu0 0
    %481 = vmatprep.subr.bf16.mxu0 0
    %482 = vmatpush1.bf16.msra.mxu0 0
    %483 = vmatprep.subr.bf16.mxu0 0
    %484 = vmatpush1.bf16.msra.mxu0 0
    %485 = vmatprep.subr.bf16.mxu0 0
    %486 = vmatpush1.bf16.msra.mxu0 0
    %487 = vmatprep.subr.bf16.mxu0 0
    %488 = vmatpush1.bf16.msra.mxu0 0
    %489 = vmatprep.subr.bf16.mxu0 0
    %490 = vmatpush1.bf16.msra.mxu0 0
    %491 = vmatprep.mubr.bf16.mxu0 0
    %492 = vmatmul.mubr.bf16.gmra.mrb[0].mxu0 %v457
    %v493 = vpop.f32.mrb[0].mxu0
    %v494 = vadd.f32 0.0, %v493
    %v495 = vpop.f32.mrb[0].mxu0
    %v496 = vadd.f32 0.0, %v495
    %v497 = vpop.f32.mrb[0].mxu0
    %v498 = vpop.f32.mrb[0].mxu0
    %499 = vdwg.mxu0
    %v500 = vadd.f32 %v496, %v392
    %v501 = vxor.u32 %v500, 2147483648
    %v502 = vmul.f32 %v501, 1.442695
    %v503 = vpow.pop %v502
    %v504 = vadd.f32 %v503, 1.0
    %v505 = vrcp.pop %v504
    %v506 = vmul.f32 1.0, %v505
    %v507 = vtanh.pop %v500
    %v508 = vmul.f32 %v506, %v414
    %510 = vrot.lane.b32.xlu0 %v507, 64
    %v511 = vpop.permute.xlu0 %510
    %v513 = vmul.f32 %v506, %v511
    %515 = vrot.lane.b32.xlu0 %v513, 32
    %v516 = vpop.permute.xlu0 %515
    %v518 = vadd.f32 %v508, %v516
    %v519 = vtanh.pop %v518
    %521 = vrot.lane.b32.xlu0 %v519, 64
    %v522 = vpop.permute.xlu0 %521
    %v524 = vmul.f32 %v506, %v522
    %v525 = vadd.f32 %v202, %v494
    %v526 = vxor.u32 %v525, 2147483648
    %v527 = vmul.f32 %v526, 1.442695
    %v528 = vpow.pop %v527
    %v529 = vadd.f32 %v528, 1.0
    %v530 = vrcp.pop %v529
    %v531 = vmul.f32 1.0, %v530
    %v532 = vtanh.pop %v525
    %v533 = vmul.f32 %v531, %v439
    %535 = vrot.lane.b32.xlu0 %v532, 64
    %v536 = vpop.permute.xlu0 %535
    %v538 = vmul.f32 %v531, %v536
    %540 = vrot.lane.b32.xlu0 %v538, 32
    %v541 = vpop.permute.xlu0 %540
    %v543 = vadd.f32 %v533, %v541
    %v544 = vtanh.pop %v543
    %546 = vrot.lane.b32.xlu0 %v544, 64
    %v547 = vpop.permute.xlu0 %546
    %v549 = vmul.f32 %v531, %v547
    %551 = vrot.lane.b32.xlu0 %v549, 32
    %v552 = vpop.permute.xlu0 %551
    %555 = vrot.lane.b32.xlu0 %v524, 64
    %v556 = vpop.permute.xlu0 %555
    %v558 = vsel %vm146, %v552, %v556
    %v559 = vpack.c.bf16 %v558, %v558
    %v561 = vsel %vm270, %v559, 0
    %563 = vmatprep.subr.bf16.mxu0 %v255
    %564 = vmatpush1.bf16.msra.mxu0 %v254
    %565 = vmatprep.subr.bf16.mxu0 %v257
    %566 = vmatpush1.bf16.msra.mxu0 %v256
    %567 = vmatprep.subr.bf16.mxu0 %v259
    %568 = vmatpush1.bf16.msra.mxu0 %v258
    %569 = vmatprep.subr.bf16.mxu0 %v261
    %570 = vmatpush1.bf16.msra.mxu0 %v260
    %571 = vmatprep.subr.bf16.mxu0 0
    %572 = vmatpush1.bf16.msra.mxu0 0
    %573 = vmatprep.subr.bf16.mxu0 0
    %574 = vmatpush1.bf16.msra.mxu0 0
    %575 = vmatprep.subr.bf16.mxu0 0
    %576 = vmatpush1.bf16.msra.mxu0 0
    %577 = vmatprep.subr.bf16.mxu0 0
    %578 = vmatpush1.bf16.msra.mxu0 0
    %579 = vmatprep.subr.bf16.mxu0 0
    %580 = vmatpush1.bf16.msra.mxu0 0
    %581 = vmatprep.subr.bf16.mxu0 0
    %582 = vmatpush1.bf16.msra.mxu0 0
    %583 = vmatprep.subr.bf16.mxu0 0
    %584 = vmatpush1.bf16.msra.mxu0 0
    %585 = vmatprep.subr.bf16.mxu0 0
    %586 = vmatpush1.bf16.msra.mxu0 0
    %587 = vmatprep.subr.bf16.mxu0 0
    %588 = vmatpush1.bf16.msra.mxu0 0
    %589 = vmatprep.subr.bf16.mxu0 0
    %590 = vmatpush1.bf16.msra.mxu0 0
    %591 = vmatprep.subr.bf16.mxu0 0
    %592 = vmatpush1.bf16.msra.mxu0 0
    %593 = vmatprep.subr.bf16.mxu0 0
    %594 = vmatpush1.bf16.msra.mxu0 0
    %595 = vmatprep.mubr.bf16.mxu0 0
    %596 = vmatmul.mubr.bf16.gmra.mrb[0].mxu0 %v561
    %v597 = vpop.f32.mrb[0].mxu0
    %v598 = vadd.f32 0.0, %v597
    %v599 = vpop.f32.mrb[0].mxu0
    %v600 = vadd.f32 0.0, %v599
    %v601 = vpop.f32.mrb[0].mxu0
    %v602 = vpop.f32.mrb[0].mxu0
    %603 = vdwg.mxu0
    %v604 = vadd.f32 %v600, %v392
    %v605 = vxor.u32 %v604, 2147483648
    %v606 = vmul.f32 %v605, 1.442695
    %v607 = vpow.pop %v606
    %v608 = vadd.f32 %v607, 1.0
    %v609 = vrcp.pop %v608
    %v610 = vmul.f32 1.0, %v609
    %v611 = vtanh.pop %v604
    %v612 = vmul.f32 %v610, %v518
    %614 = vrot.lane.b32.xlu0 %v611, 64
    %v615 = vpop.permute.xlu0 %614
    %v617 = vmul.f32 %v610, %v615
    %619 = vrot.lane.b32.xlu0 %v617, 32
    %v620 = vpop.permute.xlu0 %619
    %v622 = vadd.f32 %v612, %v620
    %v623 = vtanh.pop %v622
    %625 = vrot.lane.b32.xlu0 %v623, 64
    %v626 = vpop.permute.xlu0 %625
    %v628 = vmul.f32 %v610, %v626
    %v629 = vadd.f32 %v205, %v598
    %v630 = vxor.u32 %v629, 2147483648
    %v631 = vmul.f32 %v630, 1.442695
    %v632 = vpow.pop %v631
    %v633 = vadd.f32 %v632, 1.0
    %v634 = vrcp.pop %v633
    %v635 = vmul.f32 1.0, %v634
    %v636 = vtanh.pop %v629
    %v637 = vmul.f32 %v635, %v543
    %639 = vrot.lane.b32.xlu0 %v636, 64
    %v640 = vpop.permute.xlu0 %639
    %v642 = vmul.f32 %v635, %v640
    %644 = vrot.lane.b32.xlu0 %v642, 32
    %v645 = vpop.permute.xlu0 %644
    %v647 = vadd.f32 %v637, %v645
    %v648 = vtanh.pop %v647
    %650 = vrot.lane.b32.xlu0 %v648, 64
    %v651 = vpop.permute.xlu0 %650
    %v653 = vmul.f32 %v635, %v651
    %655 = vrot.lane.b32.xlu0 %v653, 32
    %v656 = vpop.permute.xlu0 %655
    %659 = vrot.lane.b32.xlu0 %v628, 64
    %v660 = vpop.permute.xlu0 %659
    %v662 = vsel %vm146, %v656, %v660
    %v663 = vpack.c.bf16 %v662, %v662
    %v665 = vsel %vm270, %v663, 0
    %667 = vmatprep.subr.bf16.mxu0 %v255
    %668 = vmatpush1.bf16.msra.mxu0 %v254
    %669 = vmatprep.subr.bf16.mxu0 %v257
    %670 = vmatpush1.bf16.msra.mxu0 %v256
    %671 = vmatprep.subr.bf16.mxu0 %v259
    %672 = vmatpush1.bf16.msra.mxu0 %v258
    %673 = vmatprep.subr.bf16.mxu0 %v261
    %674 = vmatpush1.bf16.msra.mxu0 %v260
    %675 = vmatprep.subr.bf16.mxu0 0
    %676 = vmatpush1.bf16.msra.mxu0 0
    %677 = vmatprep.subr.bf16.mxu0 0
    %678 = vmatpush1.bf16.msra.mxu0 0
    %679 = vmatprep.subr.bf16.mxu0 0
    %680 = vmatpush1.bf16.msra.mxu0 0
    %681 = vmatprep.subr.bf16.mxu0 0
    %682 = vmatpush1.bf16.msra.mxu0 0
    %683 = vmatprep.subr.bf16.mxu0 0
    %684 = vmatpush1.bf16.msra.mxu0 0
    %685 = vmatprep.subr.bf16.mxu0 0
    %686 = vmatpush1.bf16.msra.mxu0 0
    %687 = vmatprep.subr.bf16.mxu0 0
    %688 = vmatpush1.bf16.msra.mxu0 0
    %689 = vmatprep.subr.bf16.mxu0 0
    %690 = vmatpush1.bf16.msra.mxu0 0
    %691 = vmatprep.subr.bf16.mxu0 0
    %692 = vmatpush1.bf16.msra.mxu0 0
    %693 = vmatprep.subr.bf16.mxu0 0
    %694 = vmatpush1.bf16.msra.mxu0 0
    %695 = vmatprep.subr.bf16.mxu0 0
    %696 = vmatpush1.bf16.msra.mxu0 0
    %697 = vmatprep.subr.bf16.mxu0 0
    %698 = vmatpush1.bf16.msra.mxu0 0
    %699 = vmatprep.mubr.bf16.mxu0 0
    %700 = vmatmul.mubr.bf16.gmra.mrb[0].mxu0 %v665
    %v701 = vpop.f32.mrb[0].mxu0
    %v702 = vadd.f32 0.0, %v701
    %v703 = vpop.f32.mrb[0].mxu0
    %v704 = vadd.f32 0.0, %v703
    %v705 = vpop.f32.mrb[0].mxu0
    %v706 = vpop.f32.mrb[0].mxu0
    %707 = vdwg.mxu0
    %v708 = vadd.f32 %v704, %v392
    %v709 = vxor.u32 %v708, 2147483648
    %v710 = vmul.f32 %v709, 1.442695
    %v711 = vpow.pop %v710
    %v712 = vadd.f32 %v711, 1.0
    %v713 = vrcp.pop %v712
    %v714 = vmul.f32 1.0, %v713
    %v715 = vtanh.pop %v708
    %v716 = vmul.f32 %v714, %v622
    %718 = vrot.lane.b32.xlu0 %v715, 64
    %v719 = vpop.permute.xlu0 %718
    %v721 = vmul.f32 %v714, %v719
    %723 = vrot.lane.b32.xlu0 %v721, 32
    %v724 = vpop.permute.xlu0 %723
    %v726 = vadd.f32 %v716, %v724
    %v727 = vtanh.pop %v726
    %729 = vrot.lane.b32.xlu0 %v727, 64
    %v730 = vpop.permute.xlu0 %729
    %v732 = vmul.f32 %v714, %v730
    %v733 = vadd.f32 %v210, %v702
    %v734 = vxor.u32 %v733, 2147483648
    %v735 = vmul.f32 %v734, 1.442695
    %v736 = vpow.pop %v735
    %v737 = vadd.f32 %v736, 1.0
    %v738 = vrcp.pop %v737
    %v739 = vmul.f32 1.0, %v738
    %v740 = vtanh.pop %v733
    %v741 = vmul.f32 %v739, %v647
    %743 = vrot.lane.b32.xlu0 %v740, 64
    %v744 = vpop.permute.xlu0 %743
    %v746 = vmul.f32 %v739, %v744
    %748 = vrot.lane.b32.xlu0 %v746, 32
    %v749 = vpop.permute.xlu0 %748
    %v751 = vadd.f32 %v741, %v749
    %v752 = vtanh.pop %v751
    %754 = vrot.lane.b32.xlu0 %v752, 64
    %v755 = vpop.permute.xlu0 %754
    %v757 = vmul.f32 %v739, %v755
    %759 = vrot.lane.b32.xlu0 %v757, 32
    %v760 = vpop.permute.xlu0 %759
    %763 = vrot.lane.b32.xlu0 %v732, 64
    %v764 = vpop.permute.xlu0 %763
    %v766 = vsel %vm146, %v760, %v764
    %v767 = vpack.c.bf16 %v766, %v766
    %v769 = vsel %vm270, %v767, 0
    %771 = vmatprep.subr.bf16.mxu0 %v255
    %772 = vmatpush1.bf16.msra.mxu0 %v254
    %773 = vmatprep.subr.bf16.mxu0 %v257
    %774 = vmatpush1.bf16.msra.mxu0 %v256
    %775 = vmatprep.subr.bf16.mxu0 %v259
    %776 = vmatpush1.bf16.msra.mxu0 %v258
    %777 = vmatprep.subr.bf16.mxu0 %v261
    %778 = vmatpush1.bf16.msra.mxu0 %v260
    %779 = vmatprep.subr.bf16.mxu0 0
    %780 = vmatpush1.bf16.msra.mxu0 0
    %781 = vmatprep.subr.bf16.mxu0 0
    %782 = vmatpush1.bf16.msra.mxu0 0
    %783 = vmatprep.subr.bf16.mxu0 0
    %784 = vmatpush1.bf16.msra.mxu0 0
    %785 = vmatprep.subr.bf16.mxu0 0
    %786 = vmatpush1.bf16.msra.mxu0 0
    %787 = vmatprep.subr.bf16.mxu0 0
    %788 = vmatpush1.bf16.msra.mxu0 0
    %789 = vmatprep.subr.bf16.mxu0 0
    %790 = vmatpush1.bf16.msra.mxu0 0
    %791 = vmatprep.subr.bf16.mxu0 0
    %792 = vmatpush1.bf16.msra.mxu0 0
    %793 = vmatprep.subr.bf16.mxu0 0
    %794 = vmatpush1.bf16.msra.mxu0 0
    %795 = vmatprep.subr.bf16.mxu0 0
    %796 = vmatpush1.bf16.msra.mxu0 0
    %797 = vmatprep.subr.bf16.mxu0 0
    %798 = vmatpush1.bf16.msra.mxu0 0
    %799 = vmatprep.subr.bf16.mxu0 0
    %800 = vmatpush1.bf16.msra.mxu0 0
    %801 = vmatprep.subr.bf16.mxu0 0
    %802 = vmatpush1.bf16.msra.mxu0 0
    %803 = vmatprep.mubr.bf16.mxu0 0
    %804 = vmatmul.mubr.bf16.gmra.mrb[0].mxu0 %v769
    %v805 = vpop.f32.mrb[0].mxu0
    %v806 = vadd.f32 0.0, %v805
    %v807 = vpop.f32.mrb[0].mxu0
    %v808 = vadd.f32 0.0, %v807
    %v809 = vpop.f32.mrb[0].mxu0
    %v810 = vpop.f32.mrb[0].mxu0
    %811 = vdwg.mxu0
    %v812 = vadd.f32 %v808, %v392
    %v813 = vxor.u32 %v812, 2147483648
    %v814 = vmul.f32 %v813, 1.442695
    %v815 = vpow.pop %v814
    %v816 = vadd.f32 %v815, 1.0
    %v817 = vrcp.pop %v816
    %v818 = vmul.f32 1.0, %v817
    %v819 = vtanh.pop %v812
    %v820 = vmul.f32 %v818, %v726
    %822 = vrot.lane.b32.xlu0 %v819, 64
    %v823 = vpop.permute.xlu0 %822
    %v825 = vmul.f32 %v818, %v823
    %827 = vrot.lane.b32.xlu0 %v825, 32
    %v828 = vpop.permute.xlu0 %827
    %v830 = vadd.f32 %v820, %v828
    %v831 = vtanh.pop %v830
    %833 = vrot.lane.b32.xlu0 %v831, 64
    %v834 = vpop.permute.xlu0 %833
    %v836 = vmul.f32 %v818, %v834
    %v837 = vadd.f32 %v213, %v806
    %v838 = vxor.u32 %v837, 2147483648
    %v839 = vmul.f32 %v838, 1.442695
    %v840 = vpow.pop %v839
    %v841 = vadd.f32 %v840, 1.0
    %v842 = vrcp.pop %v841
    %v843 = vmul.f32 1.0, %v842
    %v844 = vtanh.pop %v837
    %v845 = vmul.f32 %v843, %v751
    %847 = vrot.lane.b32.xlu0 %v844, 64
    %v848 = vpop.permute.xlu0 %847
    %v850 = vmul.f32 %v843, %v848
    %852 = vrot.lane.b32.xlu0 %v850, 32
    %v853 = vpop.permute.xlu0 %852
    %v855 = vadd.f32 %v845, %v853
    %v856 = vtanh.pop %v855
    %858 = vrot.lane.b32.xlu0 %v856, 64
    %v859 = vpop.permute.xlu0 %858
    %v861 = vmul.f32 %v843, %v859
    %863 = vrot.lane.b32.xlu0 %v861, 32
    %v864 = vpop.permute.xlu0 %863
    %867 = vrot.lane.b32.xlu0 %v836, 64
    %v868 = vpop.permute.xlu0 %867
    %v870 = vsel %vm146, %v864, %v868
    %v871 = vpack.c.bf16 %v870, %v870
    %v873 = vsel %vm270, %v871, 0
    %875 = vmatprep.subr.bf16.mxu0 %v255
    %876 = vmatpush1.bf16.msra.mxu0 %v254
    %877 = vmatprep.subr.bf16.mxu0 %v257
    %878 = vmatpush1.bf16.msra.mxu0 %v256
    %879 = vmatprep.subr.bf16.mxu0 %v259
    %880 = vmatpush1.bf16.msra.mxu0 %v258
    %881 = vmatprep.subr.bf16.mxu0 %v261
    %882 = vmatpush1.bf16.msra.mxu0 %v260
    %883 = vmatprep.subr.bf16.mxu0 0
    %884 = vmatpush1.bf16.msra.mxu0 0
    %885 = vmatprep.subr.bf16.mxu0 0
    %886 = vmatpush1.bf16.msra.mxu0 0
    %887 = vmatprep.subr.bf16.mxu0 0
    %888 = vmatpush1.bf16.msra.mxu0 0
    %889 = vmatprep.subr.bf16.mxu0 0
    %890 = vmatpush1.bf16.msra.mxu0 0
    %891 = vmatprep.subr.bf16.mxu0 0
    %892 = vmatpush1.bf16.msra.mxu0 0
    %893 = vmatprep.subr.bf16.mxu0 0
    %894 = vmatpush1.bf16.msra.mxu0 0
    %895 = vmatprep.subr.bf16.mxu0 0
    %896 = vmatpush1.bf16.msra.mxu0 0
    %897 = vmatprep.subr.bf16.mxu0 0
    %898 = vmatpush1.bf16.msra.mxu0 0
    %899 = vmatprep.subr.bf16.mxu0 0
    %900 = vmatpush1.bf16.msra.mxu0 0
    %901 = vmatprep.subr.bf16.mxu0 0
    %902 = vmatpush1.bf16.msra.mxu0 0
    %903 = vmatprep.subr.bf16.mxu0 0
    %904 = vmatpush1.bf16.msra.mxu0 0
    %905 = vmatprep.subr.bf16.mxu0 0
    %906 = vmatpush1.bf16.msra.mxu0 0
    %907 = vmatprep.mubr.bf16.mxu0 0
    %908 = vmatmul.mubr.bf16.gmra.mrb[0].mxu0 %v873
    %v909 = vpop.f32.mrb[0].mxu0
    %v910 = vadd.f32 0.0, %v909
    %v911 = vpop.f32.mrb[0].mxu0
    %v912 = vadd.f32 0.0, %v911
    %v913 = vpop.f32.mrb[0].mxu0
    %v914 = vpop.f32.mrb[0].mxu0
    %915 = vdwg.mxu0
    %v916 = vadd.f32 %v912, %v392
    %v917 = vxor.u32 %v916, 2147483648
    %v918 = vmul.f32 %v917, 1.442695
    %v919 = vpow.pop %v918
    %v920 = vadd.f32 %v919, 1.0
    %v921 = vrcp.pop %v920
    %v922 = vmul.f32 1.0, %v921
    %v923 = vtanh.pop %v916
    %v924 = vmul.f32 %v922, %v830
    %926 = vrot.lane.b32.xlu0 %v923, 64
    %v927 = vpop.permute.xlu0 %926
    %v929 = vmul.f32 %v922, %v927
    %931 = vrot.lane.b32.xlu0 %v929, 32
    %v932 = vpop.permute.xlu0 %931
    %v934 = vadd.f32 %v924, %v932
    %v935 = vtanh.pop %v934
    %937 = vrot.lane.b32.xlu0 %v935, 64
    %v938 = vpop.permute.xlu0 %937
    %v940 = vmul.f32 %v922, %v938
    %v941 = vadd.f32 %v218, %v910
    %v942 = vxor.u32 %v941, 2147483648
    %v943 = vmul.f32 %v942, 1.442695
    %v944 = vpow.pop %v943
    %v945 = vadd.f32 %v944, 1.0
    %v946 = vrcp.pop %v945
    %v947 = vmul.f32 1.0, %v946
    %v948 = vtanh.pop %v941
    %v949 = vmul.f32 %v947, %v855
    %951 = vrot.lane.b32.xlu0 %v948, 64
    %v952 = vpop.permute.xlu0 %951
    %v954 = vmul.f32 %v947, %v952
    %956 = vrot.lane.b32.xlu0 %v954, 32
    %v957 = vpop.permute.xlu0 %956
    %v959 = vadd.f32 %v949, %v957
    %v960 = vtanh.pop %v959
    %962 = vrot.lane.b32.xlu0 %v960, 64
    %v963 = vpop.permute.xlu0 %962
    %v965 = vmul.f32 %v947, %v963
    %967 = vrot.lane.b32.xlu0 %v965, 32
    %v968 = vpop.permute.xlu0 %967
    %971 = vrot.lane.b32.xlu0 %v940, 64
    %v972 = vpop.permute.xlu0 %971
    %v974 = vsel %vm146, %v968, %v972
    %v975 = vpack.c.bf16 %v974, %v974
    %v977 = vsel %vm270, %v975, 0
    %979 = vmatprep.subr.bf16.mxu0 %v255
    %980 = vmatpush1.bf16.msra.mxu0 %v254
    %981 = vmatprep.subr.bf16.mxu0 %v257
    %982 = vmatpush1.bf16.msra.mxu0 %v256
    %983 = vmatprep.subr.bf16.mxu0 %v259
    %984 = vmatpush1.bf16.msra.mxu0 %v258
    %985 = vmatprep.subr.bf16.mxu0 %v261
    %986 = vmatpush1.bf16.msra.mxu0 %v260
    %987 = vmatprep.subr.bf16.mxu0 0
    %988 = vmatpush1.bf16.msra.mxu0 0
    %989 = vmatprep.subr.bf16.mxu0 0
    %990 = vmatpush1.bf16.msra.mxu0 0
    %991 = vmatprep.subr.bf16.mxu0 0
    %992 = vmatpush1.bf16.msra.mxu0 0
    %993 = vmatprep.subr.bf16.mxu0 0
    %994 = vmatpush1.bf16.msra.mxu0 0
    %995 = vmatprep.subr.bf16.mxu0 0
    %996 = vmatpush1.bf16.msra.mxu0 0
    %997 = vmatprep.subr.bf16.mxu0 0
    %998 = vmatpush1.bf16.msra.mxu0 0
    %999 = vmatprep.subr.bf16.mxu0 0
    %1000 = vmatpush1.bf16.msra.mxu0 0
    %1001 = vmatprep.subr.bf16.mxu0 0
    %1002 = vmatpush1.bf16.msra.mxu0 0
    %1003 = vmatprep.subr.bf16.mxu0 0
    %1004 = vmatpush1.bf16.msra.mxu0 0
    %1005 = vmatprep.subr.bf16.mxu0 0
    %1006 = vmatpush1.bf16.msra.mxu0 0
    %1007 = vmatprep.subr.bf16.mxu0 0
    %1008 = vmatpush1.bf16.msra.mxu0 0
    %1009 = vmatprep.subr.bf16.mxu0 0
    %1010 = vmatpush1.bf16.msra.mxu0 0
    %1011 = vmatprep.mubr.bf16.mxu0 0
    %1012 = vmatmul.mubr.bf16.gmra.mrb[0].mxu0 %v977
    %v1013 = vpop.f32.mrb[0].mxu0
    %v1014 = vadd.f32 0.0, %v1013
    %v1015 = vpop.f32.mrb[0].mxu0
    %v1016 = vadd.f32 0.0, %v1015
    %v1017 = vpop.f32.mrb[0].mxu0
    %v1018 = vpop.f32.mrb[0].mxu0
    %1019 = vdwg.mxu0
    %v1020 = vadd.f32 %v1016, %v392
    %v1021 = vxor.u32 %v1020, 2147483648
    %v1022 = vmul.f32 %v1021, 1.442695
    %v1023 = vpow.pop %v1022
    %v1024 = vadd.f32 %v1023, 1.0
    %v1025 = vrcp.pop %v1024
    %v1026 = vmul.f32 1.0, %v1025
    %v1027 = vtanh.pop %v1020
    %v1028 = vmul.f32 %v1026, %v934
    %1030 = vrot.lane.b32.xlu0 %v1027, 64
    %v1031 = vpop.permute.xlu0 %1030
    %v1033 = vmul.f32 %v1026, %v1031
    %1035 = vrot.lane.b32.xlu0 %v1033, 32
    %v1036 = vpop.permute.xlu0 %1035
    %v1038 = vadd.f32 %v1028, %v1036
    %v1039 = vtanh.pop %v1038
    %1041 = vrot.lane.b32.xlu0 %v1039, 64
    %v1042 = vpop.permute.xlu0 %1041
    %v1044 = vmul.f32 %v1026, %v1042
    %v1045 = vadd.f32 %v221, %v1014
    %v1046 = vxor.u32 %v1045, 2147483648
    %v1047 = vmul.f32 %v1046, 1.442695
    %v1048 = vpow.pop %v1047
    %v1049 = vadd.f32 %v1048, 1.0
    %v1050 = vrcp.pop %v1049
    %v1051 = vmul.f32 1.0, %v1050
    %v1052 = vtanh.pop %v1045
    %v1053 = vmul.f32 %v1051, %v959
    %1055 = vrot.lane.b32.xlu0 %v1052, 64
    %v1056 = vpop.permute.xlu0 %1055
    %v1058 = vmul.f32 %v1051, %v1056
    %1060 = vrot.lane.b32.xlu0 %v1058, 32
    %v1061 = vpop.permute.xlu0 %1060
    %v1063 = vadd.f32 %v1053, %v1061
    %v1064 = vtanh.pop %v1063
    %1066 = vrot.lane.b32.xlu0 %v1064, 64
    %v1067 = vpop.permute.xlu0 %1066
    %v1069 = vmul.f32 %v1051, %v1067
    %1071 = vrot.lane.b32.xlu0 %v1069, 32
    %v1072 = vpop.permute.xlu0 %1071
    %1075 = vrot.lane.b32.xlu0 %v1044, 64
    %v1076 = vpop.permute.xlu0 %1075
    %v1078 = vsel %vm146, %v1072, %v1076
    %v1079 = vpack.c.bf16 %v1078, %v1078
    %v1081 = vsel %vm270, %v1079, 0
    %1083 = vmatprep.subr.bf16.mxu0 %v255
    %1084 = vmatpush1.bf16.msra.mxu0 %v254
    %1085 = vmatprep.subr.bf16.mxu0 %v257
    %1086 = vmatpush1.bf16.msra.mxu0 %v256
    %1087 = vmatprep.subr.bf16.mxu0 %v259
    %1088 = vmatpush1.bf16.msra.mxu0 %v258
    %1089 = vmatprep.subr.bf16.mxu0 %v261
    %1090 = vmatpush1.bf16.msra.mxu0 %v260
    %1091 = vmatprep.subr.bf16.mxu0 0
    %1092 = vmatpush1.bf16.msra.mxu0 0
    %1093 = vmatprep.subr.bf16.mxu0 0
    %1094 = vmatpush1.bf16.msra.mxu0 0
    %1095 = vmatprep.subr.bf16.mxu0 0
    %1096 = vmatpush1.bf16.msra.mxu0 0
    %1097 = vmatprep.subr.bf16.mxu0 0
    %1098 = vmatpush1.bf16.msra.mxu0 0
    %1099 = vmatprep.subr.bf16.mxu0 0
    %1100 = vmatpush1.bf16.msra.mxu0 0
    %1101 = vmatprep.subr.bf16.mxu0 0
    %1102 = vmatpush1.bf16.msra.mxu0 0
    %1103 = vmatprep.subr.bf16.mxu0 0
    %1104 = vmatpush1.bf16.msra.mxu0 0
    %1105 = vmatprep.subr.bf16.mxu0 0
    %1106 = vmatpush1.bf16.msra.mxu0 0
    %1107 = vmatprep.subr.bf16.mxu0 0
    %1108 = vmatpush1.bf16.msra.mxu0 0
    %1109 = vmatprep.subr.bf16.mxu0 0
    %1110 = vmatpush1.bf16.msra.mxu0 0
    %1111 = vmatprep.subr.bf16.mxu0 0
    %1112 = vmatpush1.bf16.msra.mxu0 0
    %1113 = vmatprep.subr.bf16.mxu0 0
    %1114 = vmatpush1.bf16.msra.mxu0 0
    %1115 = vmatprep.mubr.bf16.mxu0 0
    %1116 = vmatmul.mubr.bf16.gmra.mrb[0].mxu0 %v1081
    %v1117 = vpop.f32.mrb[0].mxu0
    %v1118 = vpop.f32.mrb[0].mxu0
    %v1119 = vadd.f32 0.0, %v1118
    %v1120 = vpop.f32.mrb[0].mxu0
    %v1121 = vpop.f32.mrb[0].mxu0
    %1122 = vdwg.mxu0
    %v1123 = vadd.f32 %v1119, %v392
    %v1124 = vxor.u32 %v1123, 2147483648
    %v1125 = vmul.f32 %v1124, 1.442695
    %v1126 = vpow.pop %v1125
    %v1127 = vadd.f32 %v1126, 1.0
    %v1128 = vrcp.pop %v1127
    %v1129 = vmul.f32 1.0, %v1128
    %v1130 = vtanh.pop %v1123
    %v1131 = vmul.f32 %v1129, %v1038
    %1133 = vrot.lane.b32.xlu0 %v1130, 64
    %v1134 = vpop.permute.xlu0 %1133
    %v1136 = vmul.f32 %v1129, %v1134
    %1138 = vrot.lane.b32.xlu0 %v1136, 32
    %v1139 = vpop.permute.xlu0 %1138
    %v1141 = vadd.f32 %v1131, %v1139
    %v1142 = vtanh.pop %v1141
    %1144 = vrot.lane.b32.xlu0 %v1142, 64
    %v1145 = vpop.permute.xlu0 %1144
    %v1147 = vmul.f32 %v1129, %v1145
    %1149 = vrot.lane.b32.xlu0 %v1147, 96
    %v1150 = vpop.permute.xlu0 %1149
    %1153 = vrot.lane.b32.xlu0 %v1141, 64
    %v1154 = vpop.permute.xlu0 %1153
    %v1156 = vsel %vm146, %v1072, %v1063
    %v1157 = vsel %vm270, %v1156, %v1150
    %vm1158 = vcmask 785408
    %v1159 = vsel %vm1158, %v1157, %v1154
    %v1160 = vpack.c.bf16 %v1159, %v1159
    %v1161 = vlaneseq
    %v1162 = vshrl.u32 %v1161, 7
    %v1163 = vsub.s32 0, %v1162
    %v1164 = vrot.slane %v34, %v1163
    %v1181 = vunpack.c.l.b16 %v52
    %v1182 = vunpack.c.l.b16 %v53
    %v1183 = vunpack.c.l.b16 %v54
    %v1184 = vunpack.c.l.b16 %v55
    %v1185 = vunpack.c.l.b16 %v56
    %v1186 = vunpack.c.l.b16 %v57
    %v1187 = vunpack.c.l.b16 %v58
    %v1188 = vunpack.c.l.b16 %v59
    %v1189 = vunpack.c.l.b16 %v60
    %v1190 = vunpack.c.l.b16 %v61
    %v1191 = vunpack.c.l.b16 %v62
    %v1192 = vunpack.c.l.b16 %v63
    %v1193 = vunpack.c.l.b16 %v64
    %v1194 = vunpack.c.l.b16 %v65
    %v1195 = vunpack.c.l.b16 %v66
    %v1196 = vunpack.c.l.b16 %v67
    %v1197 = vpack.c.b16 %v1182, %v1181
    %v1198 = vpack.c.b16 %v1184, %v1183
    %v1199 = vpack.c.b16 %v1186, %v1185
    %v1200 = vpack.c.b16 %v1188, %v1187
    %v1201 = vpack.c.b16 %v1190, %v1189
    %v1202 = vpack.c.b16 %v1192, %v1191
    %v1203 = vpack.c.b16 %v1194, %v1193
    %v1204 = vpack.c.b16 %v1196, %v1195
    %1213 = vmatprep.subr.bf16.mxu0 0
    %1214 = vmatpush1.bf16.msra.mxu0 %v1197
    %1215 = vmatprep.subr.bf16.mxu0 0
    %1216 = vmatpush1.bf16.msra.mxu0 %v1198
    %1217 = vmatprep.subr.bf16.mxu0 0
    %1218 = vmatpush1.bf16.msra.mxu0 %v1199
    %1219 = vmatprep.subr.bf16.mxu0 0
    %1220 = vmatpush1.bf16.msra.mxu0 %v1200
    %1221 = vmatprep.subr.bf16.mxu0 0
    %1222 = vmatpush1.bf16.msra.mxu0 %v1201
    %1223 = vmatprep.subr.bf16.mxu0 0
    %1224 = vmatpush1.bf16.msra.mxu0 %v1202
    %1225 = vmatprep.subr.bf16.mxu0 0
    %1226 = vmatpush1.bf16.msra.mxu0 %v1203
    %1227 = vmatprep.subr.bf16.mxu0 0
    %1228 = vmatpush1.bf16.msra.mxu0 %v1204
    %1229 = vmatprep.subr.bf16.mxu0 0
    %1230 = vmatpush1.bf16.msra.mxu0 0
    %1231 = vmatprep.subr.bf16.mxu0 0
    %1232 = vmatpush1.bf16.msra.mxu0 0
    %1233 = vmatprep.subr.bf16.mxu0 0
    %1234 = vmatpush1.bf16.msra.mxu0 0
    %1235 = vmatprep.subr.bf16.mxu0 0
    %1236 = vmatpush1.bf16.msra.mxu0 0
    %1237 = vmatprep.subr.bf16.mxu0 0
    %1238 = vmatpush1.bf16.msra.mxu0 0
    %1239 = vmatprep.subr.bf16.mxu0 0
    %1240 = vmatpush1.bf16.msra.mxu0 0
    %1241 = vmatprep.subr.bf16.mxu0 0
    %1242 = vmatpush1.bf16.msra.mxu0 0
    %1243 = vmatprep.subr.bf16.mxu0 0
    %1244 = vmatpush1.bf16.msra.mxu0 0
    %1245 = vmatprep.mubr.bf16.mxu0 0
    %1246 = vmatmul.mubr.bf16.gmra.mrb[0].mxu0 %v1160
    %v1247 = vpop.f32.mrb[0].mxu0
    %v1248 = vadd.f32 %v1164, %v1247
    %v1249 = vpop.f32.mrb[0].mxu0
    %v1250 = vpop.f32.mrb[0].mxu0
    %v1251 = vpop.f32.mrb[0].mxu0
    %1252 = vdwg.mxu0
    %1253 = vst [vmem:[%s4] sm:$0xff] %v1248
    // Predicated region
    $region22: #{lstm_encoder_forward.1} parent=1 // pred_check
      _
    $region23: #{lstm_encoder_forward.1} parent=1 // pred_check_branch
      %1255 = sbr.rel (0) target = $region25
    $region24: #{lstm_encoder_forward.1} parent=1 // pred_region
      _
    $region25: #{lstm_encoder_forward.1} parent=1 // pred_fallthru
      _
    // Predicated region
    $region26: #{lstm_encoder_forward.1} parent=1 // pred_check
      _
    $region27: #{lstm_encoder_forward.1} parent=1 // pred_check_branch
      %1257 = sbr.rel (0) target = $region29
    $region28: #{lstm_encoder_forward.1} parent=1 // pred_region
      _
    $region29: #{lstm_encoder_forward.1} parent=1 // pred_fallthru
      _
    %1258 = vsyncpa [#allocation3], 1

</llo_original>
